<compile_context>
chip_gen: v5e
topology: v5e:2x2
jax: 0.10.0
libtpu: 0.0.40
codegen_flags: <defaults>
</compile_context>

<pallas_src>
import jax
import jax.numpy as jnp
import numpy as np
from jax import lax
from jax.experimental import pallas as pl
from jax.experimental.pallas import tpu as pltpu


def _round_up(x, m):
    return (x + m - 1) // m * m


def _pick_rowpad(W, P):
    """Top-halo row count for the flat channel-major depthwise scratch.

    Must be >= P + 1 so all halo reads stay in bounds; prefer a value that
    puts the interior store at a 128-lane-aligned flat offset
    (rowpad * W % 128 == 0) so the largest store in the kernel is aligned.
    """
    lo = P + 1
    for cand in range(lo, lo + 33):
        if (cand * W) % 128 == 0:
            return cand
    return max(lo, 8)


# --------------------------------------------------------------------------
# stride == 1: flat channel-major kernel (lane-dense everywhere)
# --------------------------------------------------------------------------
def _make_flat_kernel(H, W, Cin, Cmid, Cout, K, apply_residual, rowpad):
    P = K // 2
    HW = H * W
    halo = P * W + P
    top0 = (rowpad - P) * W - P          # start of top zero region (covers
    bot0 = (rowpad + H) * W              # all halo reads incl. column spill)

    def kernel(x_ref, w1_ref, s1_ref, b1_ref, dw_ref, mask_ref,
               s2_ref, b2_ref, w3_ref, s3_ref, b3_ref, o_ref, pad_ref):
        # ---- 1x1 expand conv, channel-major: (Cmid,Cin)@(Cin,H*W) on MXU ---
        x = x_ref[0]                                           # (Cin, HW)
        h = lax.dot_general(w1_ref[...], x.astype(jnp.bfloat16),
                            dimension_numbers=(((1,), (0,)), ((), ())),
                            preferred_element_type=jnp.float32)  # (Cmid, HW)
        h = jnp.maximum(h * s1_ref[...] + b1_ref[...], 0.0)

        # ---- KxK depthwise conv on a flat zero-padded scratch --------------
        # Zero only the halo regions (every step -> megacore-safe), then
        # store the interior at a lane-aligned flat offset (rowpad*W).
        pad_ref[:, pl.ds(top0, halo)] = jnp.zeros((Cmid, halo), jnp.float32)
        pad_ref[:, pl.ds(bot0, halo)] = jnp.zeros((Cmid, halo), jnp.float32)
        pad_ref[:, pl.ds(rowpad * W, HW)] = h

        # Hoist the K*K per-channel tap weights, each (Cmid, 1).
        taps = [dw_ref[t] for t in range(K * K)]

        acc = None
        for dx in range(K):
            col = None
            for dy in range(K):
                base = (rowpad + dy - P) * W + (dx - P)
                win = pad_ref[:, pl.ds(base, HW)]              # (Cmid, HW)
                term = win * taps[dy * K + dx]
                col = term if col is None else col + term
            if dx != P:
                # zero columns that wrapped across a row boundary in the
                # flat layout (one mask multiply per dx, not per tap)
                col = col * mask_ref[pl.ds(dx, 1), :]          # (1, HW) bcast
            acc = col if acc is None else acc + col
        h2 = jnp.maximum(acc * s2_ref[...] + b2_ref[...], 0.0)  # (Cmid, HW)

        # ---- 1x1 project conv, channel-major: (Cout,Cmid)@(Cmid,H*W) -------
        y = lax.dot_general(w3_ref[...], h2.astype(jnp.bfloat16),
                            dimension_numbers=(((1,), (0,)), ((), ())),
                            preferred_element_type=jnp.float32)  # (Cout, HW)
        y = y * s3_ref[...] + b3_ref[...]
        if apply_residual:
            y = y + x                      # x is f32 when residual is applied
        o_ref[0] = y

    return kernel


def _forward_stride1(x_nchw, w1_oihw, s1, b1, dw_oihw, s2, b2,
                     w3_oihw, s3, b3, K):
    N, Cin, H, W = x_nchw.shape
    Cmid = int(w1_oihw.shape[0])
    Cout = int(w3_oihw.shape[0])
    P = K // 2
    HW = H * W
    apply_residual = (Cin == Cout)
    rowpad = _pick_rowpad(W, P)
    L = (rowpad + H + P + 1) * W

    kernel = _make_flat_kernel(H, W, Cin, Cmid, Cout, K, apply_residual,
                               rowpad)

    # Native NCHW-flat activation block: serves both the expand matmul (cast
    # to bf16 inside the kernel) and the residual add -> no wrapper transpose
    # and no duplicate residual fetch of x.
    x_flat = x_nchw.reshape(N, Cin, HW)
    if not apply_residual:
        x_flat = x_flat.astype(jnp.bfloat16)     # residual not needed: halve x

    w1k = w1_oihw[:, :, 0, 0].astype(jnp.bfloat16)                 # (Cmid,Cin)
    w3k = w3_oihw[:, :, 0, 0].astype(jnp.bfloat16)                 # (Cout,Cmid)
    dwk = jnp.transpose(dw_oihw[:, 0], (1, 2, 0)).reshape(K * K, Cmid, 1)
    s1r, b1r = s1.reshape(Cmid, 1), b1.reshape(Cmid, 1)
    s2r, b2r = s2.reshape(Cmid, 1), b2.reshape(Cmid, 1)
    s3r, b3r = s3.reshape(Cout, 1), b3.reshape(Cout, 1)

    # Per-dx column-validity masks, precomputed on host (avoids in-kernel
    # iota / integer-mod lowering).
    col = np.arange(HW, dtype=np.int64) % W
    mask_np = np.stack(
        [((col + dx - P >= 0) & (col + dx - P < W)).astype(np.float32)
         for dx in range(K)], axis=0)                          # (K, HW)
    masks = jnp.asarray(mask_np)

    inputs = [x_flat, w1k, s1r, b1r, dwk, masks, s2r, b2r, w3k, s3r, b3r]
    in_specs = [
        pl.BlockSpec((1, Cin, HW), lambda n: (n, 0, 0)),
        pl.BlockSpec((Cmid, Cin), lambda n: (0, 0)),
        pl.BlockSpec((Cmid, 1), lambda n: (0, 0)),
        pl.BlockSpec((Cmid, 1), lambda n: (0, 0)),
        pl.BlockSpec((K * K, Cmid, 1), lambda n: (0, 0, 0)),
        pl.BlockSpec((K, HW), lambda n: (0, 0)),
        pl.BlockSpec((Cmid, 1), lambda n: (0, 0)),
        pl.BlockSpec((Cmid, 1), lambda n: (0, 0)),
        pl.BlockSpec((Cout, Cmid), lambda n: (0, 0)),
        pl.BlockSpec((Cout, 1), lambda n: (0, 0)),
        pl.BlockSpec((Cout, 1), lambda n: (0, 0)),
    ]

    flops = N * (2 * HW * Cin * Cmid + 2 * K * K * HW * Cmid
                 + 2 * HW * Cmid * Cout)
    xb = 4 if apply_residual else 2
    bytes_accessed = int(
        N * Cin * HW * xb                                   # x (f32 or bf16)
        + N * Cout * HW * 4                                 # out (f32)
        + (Cin * Cmid + Cout * Cmid) * 2                    # conv weights bf16
        + (K * K * Cmid + 4 * Cmid + 2 * Cout + K * HW) * 4)  # dw+BN+masks

    out = pl.pallas_call(
        kernel,
        out_shape=jax.ShapeDtypeStruct((N, Cout, HW), jnp.float32),
        grid=(N,),
        in_specs=in_specs,
        out_specs=pl.BlockSpec((1, Cout, HW), lambda n: (n, 0, 0)),
        scratch_shapes=[pltpu.VMEM((Cmid, L), jnp.float32)],
        compiler_params=pltpu.CompilerParams(
            dimension_semantics=("parallel",),
            vmem_limit_bytes=32 * 1024 * 1024),
        cost_estimate=pl.CostEstimate(flops=flops, transcendentals=0,
                                      bytes_accessed=bytes_accessed),
    )(*inputs)

    # (N, Cout, H*W) is already NCHW-flat: final reshape is free.
    return out.reshape(N, Cout, H, W)


# --------------------------------------------------------------------------
# stride == 2: spatial-major kernel (strided windows; no residual possible)
# --------------------------------------------------------------------------
def _make_s2_kernel(H, W, Cmid, Cout, K, stride, Wp_pad, col0):
    P = K // 2
    Hp = H + 2 * P
    Ho = (H + 2 * P - K) // stride + 1
    Wo = (W + 2 * P - K) // stride + 1

    def kernel(x_ref, w1_ref, s1_ref, b1_ref, dw_ref, s2_ref, b2_ref,
               w3_ref, s3_ref, b3_ref, o_ref, pad_ref):
        # ---- 1x1 expand conv (MXU, bf16) + BN + ReLU -----------------------
        x = x_ref[0]                                           # (H*W, Cin) bf16
        h = jnp.dot(x, w1_ref[...], preferred_element_type=jnp.float32)
        h = jnp.maximum(h * s1_ref[...] + b1_ref[...], 0.0)
        h = h.reshape(H, W, Cmid)

        # ---- KxK depthwise conv (zero pad, stride) + BN + ReLU -------------
        # Halo-only zeroing (every step -> megacore-safe); interior stored at
        # the sublane-aligned column offset col0 (= 8).
        pad_ref[pl.ds(0, P), :, :] = jnp.zeros((P, Wp_pad, Cmid), jnp.float32)
        pad_ref[pl.ds(P + H, Hp - P - H), :, :] = jnp.zeros(
            (Hp - P - H, Wp_pad, Cmid), jnp.float32)
        pad_ref[pl.ds(P, H), pl.ds(col0 - P, P), :] = jnp.zeros(
            (H, P, Cmid), jnp.float32)
        pad_ref[pl.ds(P, H), pl.ds(col0 + W, Wp_pad - col0 - W), :] = jnp.zeros(
            (H, Wp_pad - col0 - W, Cmid), jnp.float32)
        pad_ref[pl.ds(P, H), pl.ds(col0, W), :] = h

        dw_taps = [dw_ref[t] for t in range(K * K)]            # each (Cmid,)

        acc = jnp.zeros((Ho, Wo, Cmid), jnp.float32)
        for dy in range(K):
            for dx in range(K):
                win = pad_ref[pl.ds(dy, Ho, stride),
                              pl.ds(col0 - P + dx, Wo, stride), :]
                acc = acc + win * dw_taps[dy * K + dx]          # (Ho,Wo,Cmid)
        h2 = jnp.maximum(acc * s2_ref[...] + b2_ref[...], 0.0)

        # ---- 1x1 project conv (MXU, bf16) + BN, channel-major output -------
        h2b = h2.reshape(Ho * Wo, Cmid).astype(jnp.bfloat16)
        y = lax.dot_general(w3_ref[...], h2b,
                            dimension_numbers=(((1,), (1,)), ((), ())),
                            preferred_element_type=jnp.float32)  # (Cout,HoWo)
        y = y * s3_ref[...] + b3_ref[...]
        o_ref[0] = y

    return kernel, Ho, Wo


def _forward_stride2(x_nchw, w1_oihw, s1, b1, dw_oihw, s2, b2,
                     w3_oihw, s3, b3, K, stride):
    N, Cin, H, W = x_nchw.shape
    Cmid = int(w1_oihw.shape[0])
    Cout = int(w3_oihw.shape[0])
    P = K // 2
    Hp = H + 2 * P
    col0 = 8                                     # sublane-aligned interior
    Wp_pad = _round_up(col0 + W + P, 8)

    kernel, Ho, Wo = _make_s2_kernel(H, W, Cmid, Cout, K, stride, Wp_pad, col0)
    HW, HoWo = H * W, Ho * Wo

    # TODO(synk): the stride-2 path (never residual) still materializes an
    # NHWC copy of x; fold into the channel-major flat layout once strided
    # windows are reworked for it.
    x_nhwc = jnp.transpose(x_nchw, (0, 2, 3, 1)).reshape(N, HW, Cin)
    x_nhwc = x_nhwc.astype(jnp.bfloat16)

    w1k = jnp.transpose(w1_oihw[:, :, 0, 0], (1, 0)).astype(jnp.bfloat16)
    w3k = w3_oihw[:, :, 0, 0].astype(jnp.bfloat16)
    dwk = jnp.transpose(dw_oihw[:, 0].reshape(Cmid, K * K), (1, 0))
    s1r, b1r = s1.reshape(1, Cmid), b1.reshape(1, Cmid)
    s2r, b2r = s2.reshape(1, Cmid), b2.reshape(1, Cmid)
    s3r, b3r = s3.reshape(Cout, 1), b3.reshape(Cout, 1)

    inputs = [x_nhwc, w1k, s1r, b1r, dwk, s2r, b2r, w3k, s3r, b3r]
    in_specs = [
        pl.BlockSpec((1, HW, Cin), lambda n: (n, 0, 0)),
        pl.BlockSpec((Cin, Cmid), lambda n: (0, 0)),
        pl.BlockSpec((1, Cmid), lambda n: (0, 0)),
        pl.BlockSpec((1, Cmid), lambda n: (0, 0)),
        pl.BlockSpec((K * K, Cmid), lambda n: (0, 0)),
        pl.BlockSpec((1, Cmid), lambda n: (0, 0)),
        pl.BlockSpec((1, Cmid), lambda n: (0, 0)),
        pl.BlockSpec((Cout, Cmid), lambda n: (0, 0)),
        pl.BlockSpec((Cout, 1), lambda n: (0, 0)),
        pl.BlockSpec((Cout, 1), lambda n: (0, 0)),
    ]

    flops = N * (2 * HW * Cin * Cmid + 2 * K * K * HoWo * Cmid
                 + 2 * HoWo * Cmid * Cout)
    bytes_accessed = int(
        N * HW * Cin * 2 + N * Cout * HoWo * 4
        + (Cin * Cmid + Cout * Cmid) * 2
        + (K * K * Cmid + 4 * Cmid + 2 * Cout) * 4)

    out = pl.pallas_call(
        kernel,
        out_shape=jax.ShapeDtypeStruct((N, Cout, HoWo), jnp.float32),
        grid=(N,),
        in_specs=in_specs,
        out_specs=pl.BlockSpec((1, Cout, HoWo), lambda n: (n, 0, 0)),
        scratch_shapes=[pltpu.VMEM((Hp, Wp_pad, Cmid), jnp.float32)],
        compiler_params=pltpu.CompilerParams(
            dimension_semantics=("parallel",),
            vmem_limit_bytes=32 * 1024 * 1024),
        cost_estimate=pl.CostEstimate(flops=flops, transcendentals=0,
                                      bytes_accessed=bytes_accessed),
    )(*inputs)
    return out.reshape(N, Cout, Ho, Wo)


# --------------------------------------------------------------------------
# Public wrapper: PyTorch-layout weights in, NCHW activations in/out.
# --------------------------------------------------------------------------
def inverted_residual_pallas(x_nchw, w1_oihw, s1, b1, dw_oihw, s2, b2,
                             w3_oihw, s3, b3, *, kernel_size, stride):
    """x_nchw: (N, Cin, H, W) f32.  Returns (N, Cout, Ho, Wo) f32."""
    K = int(kernel_size)
    assert stride in (1, 2) and K in (3, 5)
    if stride == 1:
        return _forward_stride1(x_nchw, w1_oihw, s1, b1, dw_oihw, s2, b2,
                                w3_oihw, s3, b3, K)
    return _forward_stride2(x_nchw, w1_oihw, s1, b1, dw_oihw, s2, b2,
                            w3_oihw, s3, b3, K, stride)


# --------------------------------------------------------------------------
# Pure-JAX reference (same math & same bf16 quantization points) for checking
# --------------------------------------------------------------------------
def reference_forward(x, w1_oihw, s1, b1, dw_oihw, s2, b2, w3_oihw, s3, b3,
                      *, stride, padding, apply_residual):
    dn = ("NCHW", "OIHW", "NCHW")
    mid = dw_oihw.shape[0]
    bf = jnp.bfloat16
    h = lax.conv_general_dilated(x.astype(bf), w1_oihw.astype(bf), (1, 1),
                                 "VALID", dimension_numbers=dn,
                                 preferred_element_type=jnp.float32)
    h = jnp.maximum(h * s1[None, :, None, None] + b1[None, :, None, None], 0.0)
    h = lax.conv_general_dilated(h, dw_oihw, (stride, stride),
                                 [(padding, padding), (padding, padding)],
                                 dimension_numbers=dn, feature_group_count=mid,
                                 precision=lax.Precision.HIGHEST)
    h = jnp.maximum(h * s2[None, :, None, None] + b2[None, :, None, None], 0.0)
    h = lax.conv_general_dilated(h.astype(bf), w3_oihw.astype(bf), (1, 1),
                                 "VALID", dimension_numbers=dn,
                                 preferred_element_type=jnp.float32)
    h = h * s3[None, :, None, None] + b3[None, :, None, None]
    if apply_residual:
        h = h + x
    return h


def _fold_bn(gamma, beta, running_mean, running_var, eps=1e-5):
    scale = gamma / jnp.sqrt(running_var + eps)
    bias = beta - running_mean * scale
    return scale, bias


# --------------------------------------------------------------------------
if __name__ == "__main__":
    def bn_params(key, C):
        kg, kb, km, kv = jax.random.split(key, 4)
        gamma = 0.5 + jax.random.uniform(kg, (C,), jnp.float32)
        beta = 0.1 * jax.random.normal(kb, (C,), jnp.float32)
        rmean = 0.1 * jax.random.normal(km, (C,), jnp.float32)
        rvar = 0.5 + jax.random.uniform(kv, (C,), jnp.float32)
        return _fold_bn(gamma, beta, rmean, rvar)

    def run_case(key, *, N, in_ch, out_ch, H, W, kernel_size, stride,
                 expansion):
        mid = in_ch * expansion
        P = kernel_size // 2
        ks = jax.random.split(key, 7)
        x = jax.random.normal(ks[0], (N, in_ch, H, W), jnp.float32)
        w1 = 0.2 * jax.random.normal(ks[1], (mid, in_ch, 1, 1), jnp.float32)
        dw = 0.2 * jax.random.normal(
            ks[2], (mid, 1, kernel_size, kernel_size), jnp.float32)
        w3 = 0.2 * jax.random.normal(ks[3], (out_ch, mid, 1, 1), jnp.float32)
        s1, b1 = bn_params(ks[4], mid)
        s2, b2 = bn_params(ks[5], mid)
        s3, b3 = bn_params(ks[6], out_ch)
        apply_residual = (in_ch == out_ch) and (stride == 1)

        out = inverted_residual_pallas(x, w1, s1, b1, dw, s2, b2, w3, s3, b3,
                                       kernel_size=kernel_size, stride=stride)
        out = jax.block_until_ready(out)

        ref = reference_forward(x, w1, s1, b1, dw, s2, b2, w3, s3, b3,
                                stride=stride, padding=P,
                                apply_residual=apply_residual)
        ref = jax.block_until_ready(ref)
        np.testing.assert_allclose(np.asarray(out), np.asarray(ref),
                                   rtol=5e-3, atol=5e-3)

    key = jax.random.PRNGKey(0)
    k1, k2, k3, k4 = jax.random.split(key, 4)
    # Residual MNASNet block: in == out, stride 1, k = 3, expansion 3.
    run_case(k1, N=2, in_ch=8, out_ch=8, H=16, W=16,
             kernel_size=3, stride=1, expansion=3)
    # Non-residual stride-1 block: in != out, k = 5.
    run_case(k2, N=2, in_ch=8, out_ch=16, H=16, W=16,
             kernel_size=5, stride=1, expansion=3)
    # Stride-2 stack-start blocks (no residual), k = 3 and k = 5.
    run_case(k3, N=2, in_ch=8, out_ch=16, H=16, W=16,
             kernel_size=3, stride=2, expansion=3)
    run_case(k4, N=2, in_ch=8, out_ch=16, H=16, W=16,
             kernel_size=5, stride=2, expansion=6)

    print("KERNEL_OK")
</pallas_src>

<mosaic_0001>
module attributes {stable_mosaic.version = 11 : i64} {
  func.func @kernel(%arg0: i32, %arg1: memref<1x8x256xf32, #tpu.memory_space<vmem>>, %arg2: memref<24x8xbf16, #tpu.memory_space<vmem>>, %arg3: memref<24x1xf32, #tpu.memory_space<vmem>>, %arg4: memref<24x1xf32, #tpu.memory_space<vmem>>, %arg5: memref<9x24x1xf32, #tpu.memory_space<vmem>>, %arg6: memref<3x256xf32, #tpu.memory_space<vmem>>, %arg7: memref<24x1xf32, #tpu.memory_space<vmem>>, %arg8: memref<24x1xf32, #tpu.memory_space<vmem>>, %arg9: memref<8x24xbf16, #tpu.memory_space<vmem>>, %arg10: memref<8x1xf32, #tpu.memory_space<vmem>>, %arg11: memref<8x1xf32, #tpu.memory_space<vmem>>, %arg12: memref<1x8x256xf32, #tpu.memory_space<vmem>>, %arg13: memref<24x416xf32, #tpu.memory_space<vmem>>) attributes {dimension_semantics = [#tpu.dimension_semantics<parallel>], iteration_bounds = array<i64: 2>, scalar_prefetch = 0 : i64, scratch_operands = 1 : i64, tpu.core_type = #tpu.core_type<tc>, window_params = [{transform_indices = @transform_0, window_bounds = array<i64: 1, 8, 256>}, {pipeline_mode = #tpu.pipeline_mode<synchronous>, transform_indices = @transform_1, window_bounds = array<i64: 24, 8>}, {pipeline_mode = #tpu.pipeline_mode<synchronous>, transform_indices = @transform_2, window_bounds = array<i64: 24, 1>}, {pipeline_mode = #tpu.pipeline_mode<synchronous>, transform_indices = @transform_3, window_bounds = array<i64: 24, 1>}, {pipeline_mode = #tpu.pipeline_mode<synchronous>, transform_indices = @transform_4, window_bounds = array<i64: 9, 24, 1>}, {pipeline_mode = #tpu.pipeline_mode<synchronous>, transform_indices = @transform_5, window_bounds = array<i64: 3, 256>}, {pipeline_mode = #tpu.pipeline_mode<synchronous>, transform_indices = @transform_6, window_bounds = array<i64: 24, 1>}, {pipeline_mode = #tpu.pipeline_mode<synchronous>, transform_indices = @transform_7, window_bounds = array<i64: 24, 1>}, {pipeline_mode = #tpu.pipeline_mode<synchronous>, transform_indices = @transform_8, window_bounds = array<i64: 8, 24>}, {pipeline_mode = #tpu.pipeline_mode<synchronous>, transform_indices = @transform_9, window_bounds = array<i64: 8, 1>}, {pipeline_mode = #tpu.pipeline_mode<synchronous>, transform_indices = @transform_10, window_bounds = array<i64: 8, 1>}, {transform_indices = @transform_11, window_bounds = array<i64: 1, 8, 256>}]} {
    %c0 = arith.constant 0 : index
    %c0_0 = arith.constant 0 : index
    %c0_1 = arith.constant 0 : index
    %0 = vector.load %arg1[%c0, %c0_0, %c0_1] : memref<1x8x256xf32, #tpu.memory_space<vmem>>, vector<1x8x256xf32>
    %1 = vector.shape_cast %0 : vector<1x8x256xf32> to vector<8x256xf32>
    %c0_2 = arith.constant 0 : index
    %c0_3 = arith.constant 0 : index
    %2 = vector.load %arg2[%c0_2, %c0_3] : memref<24x8xbf16, #tpu.memory_space<vmem>>, vector<24x8xbf16>
    %3 = arith.truncf %1 : vector<8x256xf32> to vector<8x256xbf16>
    %cst = arith.constant dense<0.000000e+00> : vector<24x256xf32>
    %4 = tpu.matmul %2, %3, %cst {dimension_numbers = #tpu.dot_dimension_numbers<[1], [0], [0], [1], [0, 0, 1, 1], [], []>} : vector<24x8xbf16>, vector<8x256xbf16>, vector<24x256xf32> -> vector<24x256xf32>
    %c0_4 = arith.constant 0 : index
    %c0_5 = arith.constant 0 : index
    %5 = vector.load %arg3[%c0_4, %c0_5] : memref<24x1xf32, #tpu.memory_space<vmem>>, vector<24x1xf32>
    %6 = vector.broadcast %5 : vector<24x1xf32> to vector<24x256xf32>
    %7 = arith.mulf %4, %6 : vector<24x256xf32>
    %c0_6 = arith.constant 0 : index
    %c0_7 = arith.constant 0 : index
    %8 = vector.load %arg4[%c0_6, %c0_7] : memref<24x1xf32, #tpu.memory_space<vmem>>, vector<24x1xf32>
    %9 = vector.broadcast %8 : vector<24x1xf32> to vector<24x256xf32>
    %10 = arith.addf %7, %9 : vector<24x256xf32>
    %cst_8 = arith.constant 0.000000e+00 : f32
    %11 = vector.broadcast %cst_8 : f32 to vector<24x256xf32>
    %12 = arith.maximumf %10, %11 : vector<24x256xf32>
    %cst_9 = arith.constant 0.000000e+00 : f32
    %13 = vector.broadcast %cst_9 : f32 to vector<24x17xf32>
    %c0_10 = arith.constant 0 : index
    %c111 = arith.constant 111 : index
    %14 = vector.load %arg13[%c0_10, %c111] : memref<24x416xf32, #tpu.memory_space<vmem>>, vector<24x17xf32>
    tpu.vector_store %arg13[%c0_10, %c111], %13 {strides = array<i32>} : memref<24x416xf32, #tpu.memory_space<vmem>>, vector<24x17xf32>,
    %cst_11 = arith.constant 0.000000e+00 : f32
    %15 = vector.broadcast %cst_11 : f32 to vector<24x17xf32>
    %c0_12 = arith.constant 0 : index
    %c384 = arith.constant 384 : index
    %16 = vector.load %arg13[%c0_12, %c384] : memref<24x416xf32, #tpu.memory_space<vmem>>, vector<24x17xf32>
    tpu.vector_store %arg13[%c0_12, %c384], %15 {strides = array<i32>} : memref<24x416xf32, #tpu.memory_space<vmem>>, vector<24x17xf32>,
    %c0_13 = arith.constant 0 : index
    %c128 = arith.constant 128 : index
    %17 = vector.load %arg13[%c0_13, %c128] : memref<24x416xf32, #tpu.memory_space<vmem>>, vector<24x256xf32>
    tpu.vector_store %arg13[%c0_13, %c128], %12 {strides = array<i32>} : memref<24x416xf32, #tpu.memory_space<vmem>>, vector<24x256xf32>,
    %c0_14 = arith.constant 0 : index
    %c0_15 = arith.constant 0 : index
    %c0_16 = arith.constant 0 : index
    %18 = vector.load %arg5[%c0_14, %c0_15, %c0_16] : memref<9x24x1xf32, #tpu.memory_space<vmem>>, vector<1x24x1xf32>
    %19 = vector.shape_cast %18 : vector<1x24x1xf32> to vector<24x1xf32>
    %c1 = arith.constant 1 : index
    %c0_17 = arith.constant 0 : index
    %c0_18 = arith.constant 0 : index
    %20 = vector.load %arg5[%c1, %c0_17, %c0_18] : memref<9x24x1xf32, #tpu.memory_space<vmem>>, vector<1x24x1xf32>
    %21 = vector.shape_cast %20 : vector<1x24x1xf32> to vector<24x1xf32>
    %c2 = arith.constant 2 : index
    %c0_19 = arith.constant 0 : index
    %c0_20 = arith.constant 0 : index
    %22 = vector.load %arg5[%c2, %c0_19, %c0_20] : memref<9x24x1xf32, #tpu.memory_space<vmem>>, vector<1x24x1xf32>
    %23 = vector.shape_cast %22 : vector<1x24x1xf32> to vector<24x1xf32>
    %c3 = arith.constant 3 : index
    %c0_21 = arith.constant 0 : index
    %c0_22 = arith.constant 0 : index
    %24 = vector.load %arg5[%c3, %c0_21, %c0_22] : memref<9x24x1xf32, #tpu.memory_space<vmem>>, vector<1x24x1xf32>
    %25 = vector.shape_cast %24 : vector<1x24x1xf32> to vector<24x1xf32>
    %c4 = arith.constant 4 : index
    %c0_23 = arith.constant 0 : index
    %c0_24 = arith.constant 0 : index
    %26 = vector.load %arg5[%c4, %c0_23, %c0_24] : memref<9x24x1xf32, #tpu.memory_space<vmem>>, vector<1x24x1xf32>
    %27 = vector.shape_cast %26 : vector<1x24x1xf32> to vector<24x1xf32>
    %c5 = arith.constant 5 : index
    %c0_25 = arith.constant 0 : index
    %c0_26 = arith.constant 0 : index
    %28 = vector.load %arg5[%c5, %c0_25, %c0_26] : memref<9x24x1xf32, #tpu.memory_space<vmem>>, vector<1x24x1xf32>
    %29 = vector.shape_cast %28 : vector<1x24x1xf32> to vector<24x1xf32>
    %c6 = arith.constant 6 : index
    %c0_27 = arith.constant 0 : index
    %c0_28 = arith.constant 0 : index
    %30 = vector.load %arg5[%c6, %c0_27, %c0_28] : memref<9x24x1xf32, #tpu.memory_space<vmem>>, vector<1x24x1xf32>
    %31 = vector.shape_cast %30 : vector<1x24x1xf32> to vector<24x1xf32>
    %c7 = arith.constant 7 : index
    %c0_29 = arith.constant 0 : index
    %c0_30 = arith.constant 0 : index
    %32 = vector.load %arg5[%c7, %c0_29, %c0_30] : memref<9x24x1xf32, #tpu.memory_space<vmem>>, vector<1x24x1xf32>
    %33 = vector.shape_cast %32 : vector<1x24x1xf32> to vector<24x1xf32>
    %c8 = arith.constant 8 : index
    %c0_31 = arith.constant 0 : index
    %c0_32 = arith.constant 0 : index
    %34 = vector.load %arg5[%c8, %c0_31, %c0_32] : memref<9x24x1xf32, #tpu.memory_space<vmem>>, vector<1x24x1xf32>
    %35 = vector.shape_cast %34 : vector<1x24x1xf32> to vector<24x1xf32>
    %c0_33 = arith.constant 0 : index
    %c111_34 = arith.constant 111 : index
    %36 = vector.load %arg13[%c0_33, %c111_34] : memref<24x416xf32, #tpu.memory_space<vmem>>, vector<24x256xf32>
    %37 = vector.broadcast %19 : vector<24x1xf32> to vector<24x256xf32>
    %38 = arith.mulf %36, %37 : vector<24x256xf32>
    %c0_35 = arith.constant 0 : index
    %c127 = arith.constant 127 : index
    %39 = vector.load %arg13[%c0_35, %c127] : memref<24x416xf32, #tpu.memory_space<vmem>>, vector<24x256xf32>
    %40 = vector.broadcast %25 : vector<24x1xf32> to vector<24x256xf32>
    %41 = arith.mulf %39, %40 : vector<24x256xf32>
    %42 = arith.addf %38, %41 : vector<24x256xf32>
    %c0_36 = arith.constant 0 : index
    %c143 = arith.constant 143 : index
    %43 = vector.load %arg13[%c0_36, %c143] : memref<24x416xf32, #tpu.memory_space<vmem>>, vector<24x256xf32>
    %44 = vector.broadcast %31 : vector<24x1xf32> to vector<24x256xf32>
    %45 = arith.mulf %43, %44 : vector<24x256xf32>
    %46 = arith.addf %42, %45 : vector<24x256xf32>
    %c0_37 = arith.constant 0 : index
    %c0_38 = arith.constant 0 : index
    %47 = vector.load %arg6[%c0_37, %c0_38] : memref<3x256xf32, #tpu.memory_space<vmem>>, vector<1x256xf32>
    %48 = vector.broadcast %47 : vector<1x256xf32> to vector<24x256xf32>
    %49 = arith.mulf %46, %48 : vector<24x256xf32>
    %c0_39 = arith.constant 0 : index
    %c112 = arith.constant 112 : index
    %50 = vector.load %arg13[%c0_39, %c112] : memref<24x416xf32, #tpu.memory_space<vmem>>, vector<24x256xf32>
    %51 = vector.broadcast %21 : vector<24x1xf32> to vector<24x256xf32>
    %52 = arith.mulf %50, %51 : vector<24x256xf32>
    %c0_40 = arith.constant 0 : index
    %c128_41 = arith.constant 128 : index
    %53 = vector.load %arg13[%c0_40, %c128_41] : memref<24x416xf32, #tpu.memory_space<vmem>>, vector<24x256xf32>
    %54 = vector.broadcast %27 : vector<24x1xf32> to vector<24x256xf32>
    %55 = arith.mulf %53, %54 : vector<24x256xf32>
    %56 = arith.addf %52, %55 : vector<24x256xf32>
    %c0_42 = arith.constant 0 : index
    %c144 = arith.constant 144 : index
    %57 = vector.load %arg13[%c0_42, %c144] : memref<24x416xf32, #tpu.memory_space<vmem>>, vector<24x256xf32>
    %58 = vector.broadcast %33 : vector<24x1xf32> to vector<24x256xf32>
    %59 = arith.mulf %57, %58 : vector<24x256xf32>
    %60 = arith.addf %56, %59 : vector<24x256xf32>
    %61 = arith.addf %49, %60 : vector<24x256xf32>
    %c0_43 = arith.constant 0 : index
    %c113 = arith.constant 113 : index
    %62 = vector.load %arg13[%c0_43, %c113] : memref<24x416xf32, #tpu.memory_space<vmem>>, vector<24x256xf32>
    %63 = vector.broadcast %23 : vector<24x1xf32> to vector<24x256xf32>
    %64 = arith.mulf %62, %63 : vector<24x256xf32>
    %c0_44 = arith.constant 0 : index
    %c129 = arith.constant 129 : index
    %65 = vector.load %arg13[%c0_44, %c129] : memref<24x416xf32, #tpu.memory_space<vmem>>, vector<24x256xf32>
    %66 = vector.broadcast %29 : vector<24x1xf32> to vector<24x256xf32>
    %67 = arith.mulf %65, %66 : vector<24x256xf32>
    %68 = arith.addf %64, %67 : vector<24x256xf32>
    %c0_45 = arith.constant 0 : index
    %c145 = arith.constant 145 : index
    %69 = vector.load %arg13[%c0_45, %c145] : memref<24x416xf32, #tpu.memory_space<vmem>>, vector<24x256xf32>
    %70 = vector.broadcast %35 : vector<24x1xf32> to vector<24x256xf32>
    %71 = arith.mulf %69, %70 : vector<24x256xf32>
    %72 = arith.addf %68, %71 : vector<24x256xf32>
    %c2_46 = arith.constant 2 : index
    %c0_47 = arith.constant 0 : index
    %73 = vector.load %arg6[%c2_46, %c0_47] : memref<3x256xf32, #tpu.memory_space<vmem>>, vector<1x256xf32>
    %74 = vector.broadcast %73 : vector<1x256xf32> to vector<24x256xf32>
    %75 = arith.mulf %72, %74 : vector<24x256xf32>
    %76 = arith.addf %61, %75 : vector<24x256xf32>
    %c0_48 = arith.constant 0 : index
    %c0_49 = arith.constant 0 : index
    %77 = vector.load %arg7[%c0_48, %c0_49] : memref<24x1xf32, #tpu.memory_space<vmem>>, vector<24x1xf32>
    %78 = vector.broadcast %77 : vector<24x1xf32> to vector<24x256xf32>
    %79 = arith.mulf %76, %78 : vector<24x256xf32>
    %c0_50 = arith.constant 0 : index
    %c0_51 = arith.constant 0 : index
    %80 = vector.load %arg8[%c0_50, %c0_51] : memref<24x1xf32, #tpu.memory_space<vmem>>, vector<24x1xf32>
    %81 = vector.broadcast %80 : vector<24x1xf32> to vector<24x256xf32>
    %82 = arith.addf %79, %81 : vector<24x256xf32>
    %cst_52 = arith.constant 0.000000e+00 : f32
    %83 = vector.broadcast %cst_52 : f32 to vector<24x256xf32>
    %84 = arith.maximumf %82, %83 : vector<24x256xf32>
    %c0_53 = arith.constant 0 : index
    %c0_54 = arith.constant 0 : index
    %85 = vector.load %arg9[%c0_53, %c0_54] : memref<8x24xbf16, #tpu.memory_space<vmem>>, vector<8x24xbf16>
    %86 = arith.truncf %84 : vector<24x256xf32> to vector<24x256xbf16>
    %cst_55 = arith.constant dense<0.000000e+00> : vector<8x256xf32>
    %87 = tpu.matmul %85, %86, %cst_55 {dimension_numbers = #tpu.dot_dimension_numbers<[1], [0], [0], [1], [0, 0, 1, 1], [], []>} : vector<8x24xbf16>, vector<24x256xbf16>, vector<8x256xf32> -> vector<8x256xf32>
    %c0_56 = arith.constant 0 : index
    %c0_57 = arith.constant 0 : index
    %88 = vector.load %arg10[%c0_56, %c0_57] : memref<8x1xf32, #tpu.memory_space<vmem>>, vector<8x1xf32>
    %89 = vector.broadcast %88 : vector<8x1xf32> to vector<8x256xf32>
    %90 = arith.mulf %87, %89 : vector<8x256xf32>
    %c0_58 = arith.constant 0 : index
    %c0_59 = arith.constant 0 : index
    %91 = vector.load %arg11[%c0_58, %c0_59] : memref<8x1xf32, #tpu.memory_space<vmem>>, vector<8x1xf32>
    %92 = vector.broadcast %91 : vector<8x1xf32> to vector<8x256xf32>
    %93 = arith.addf %90, %92 : vector<8x256xf32>
    %94 = arith.addf %93, %1 : vector<8x256xf32>
    %c0_60 = arith.constant 0 : index
    %c0_61 = arith.constant 0 : index
    %c0_62 = arith.constant 0 : index
    %95 = vector.load %arg12[%c0_60, %c0_61, %c0_62] : memref<1x8x256xf32, #tpu.memory_space<vmem>>, vector<1x8x256xf32>
    %96 = vector.shape_cast %95 : vector<1x8x256xf32> to vector<8x256xf32>
    %97 = vector.shape_cast %94 : vector<8x256xf32> to vector<1x8x256xf32>
    tpu.vector_store %arg12[%c0_60, %c0_61, %c0_62], %97 {strides = array<i32>} : memref<1x8x256xf32, #tpu.memory_space<vmem>>, vector<1x8x256xf32>,
    return
  }
  func.func @transform_0(%arg0: i32) -> (i32, i32, i32) {
    %c0_i32 = arith.constant 0 : i32
    %c0_i32_0 = arith.constant 0 : i32
    %c0_i32_1 = arith.constant 0 : i32
    return %arg0, %c0_i32, %c0_i32_0 : i32, i32, i32
  }
  func.func @transform_1(%arg0: i32) -> (i32, i32) {
    %c0_i32 = arith.constant 0 : i32
    %c0_i32_0 = arith.constant 0 : i32
    %c0_i32_1 = arith.constant 0 : i32
    return %c0_i32, %c0_i32_0 : i32, i32
  }
  func.func @transform_2(%arg0: i32) -> (i32, i32) {
    %c0_i32 = arith.constant 0 : i32
    %c0_i32_0 = arith.constant 0 : i32
    %c0_i32_1 = arith.constant 0 : i32
    return %c0_i32, %c0_i32_0 : i32, i32
  }
  func.func @transform_3(%arg0: i32) -> (i32, i32) {
    %c0_i32 = arith.constant 0 : i32
    %c0_i32_0 = arith.constant 0 : i32
    %c0_i32_1 = arith.constant 0 : i32
    return %c0_i32, %c0_i32_0 : i32, i32
  }
  func.func @transform_4(%arg0: i32) -> (i32, i32, i32) {
    %c0_i32 = arith.constant 0 : i32
    %c0_i32_0 = arith.constant 0 : i32
    %c0_i32_1 = arith.constant 0 : i32
    %c0_i32_2 = arith.constant 0 : i32
    return %c0_i32, %c0_i32_0, %c0_i32_1 : i32, i32, i32
  }
  func.func @transform_5(%arg0: i32) -> (i32, i32) {
    %c0_i32 = arith.constant 0 : i32
    %c0_i32_0 = arith.constant 0 : i32
    %c0_i32_1 = arith.constant 0 : i32
    return %c0_i32, %c0_i32_0 : i32, i32
  }
  func.func @transform_6(%arg0: i32) -> (i32, i32) {
    %c0_i32 = arith.constant 0 : i32
    %c0_i32_0 = arith.constant 0 : i32
    %c0_i32_1 = arith.constant 0 : i32
    return %c0_i32, %c0_i32_0 : i32, i32
  }
  func.func @transform_7(%arg0: i32) -> (i32, i32) {
    %c0_i32 = arith.constant 0 : i32
    %c0_i32_0 = arith.constant 0 : i32
    %c0_i32_1 = arith.constant 0 : i32
    return %c0_i32, %c0_i32_0 : i32, i32
  }
  func.func @transform_8(%arg0: i32) -> (i32, i32) {
    %c0_i32 = arith.constant 0 : i32
    %c0_i32_0 = arith.constant 0 : i32
    %c0_i32_1 = arith.constant 0 : i32
    return %c0_i32, %c0_i32_0 : i32, i32
  }
  func.func @transform_9(%arg0: i32) -> (i32, i32) {
    %c0_i32 = arith.constant 0 : i32
    %c0_i32_0 = arith.constant 0 : i32
    %c0_i32_1 = arith.constant 0 : i32
    return %c0_i32, %c0_i32_0 : i32, i32
  }
  func.func @transform_10(%arg0: i32) -> (i32, i32) {
    %c0_i32 = arith.constant 0 : i32
    %c0_i32_0 = arith.constant 0 : i32
    %c0_i32_1 = arith.constant 0 : i32
    return %c0_i32, %c0_i32_0 : i32, i32
  }
  func.func @transform_11(%arg0: i32) -> (i32, i32, i32) {
    %c0_i32 = arith.constant 0 : i32
    %c0_i32_0 = arith.constant 0 : i32
    %c0_i32_1 = arith.constant 0 : i32
    return %arg0, %c0_i32, %c0_i32_0 : i32, i32, i32
  }
}

</mosaic_0001>

<llo_original>
// kernel: tpu_custom_call.1
$region0: #{tpu_custom_call.1}
  #allocation0 [shape = 'u32[]', space=smem, size = 0x4, offset = 0x4, fixed_abs, tag = 'smem constant byte address 0x4 - core index']
  #allocation1 [shape = 'u32[72,128]{1,0:T(1,128)}', space=vmem, size = 0x9000, scoped, tag = 'internal scratch']
  #allocation2 [shape = 'f32[24,416]{1,0:T(8,128)}', space=vmem, size = 0xc000, scoped, tag = 'scratch operand']
  %s0 = inlined_call_operand.vmem [shape: f32[2,8,256], index: 0, kind: input, shape index: {}]
  %s1 = inlined_call_operand.vmem [shape: bf16[24,8], index: 1, kind: input, shape index: {}]
  %s2 = inlined_call_operand.vmem [shape: f32[24,1], index: 2, kind: input, shape index: {}]
  %s3 = inlined_call_operand.vmem [shape: f32[24,1], index: 3, kind: input, shape index: {}]
  %s4 = inlined_call_operand.vmem [shape: f32[9,24,1], index: 4, kind: input, shape index: {}]
  %s5 = inlined_call_operand.vmem [shape: f32[3,256], index: 5, kind: input, shape index: {}]
  %s6 = inlined_call_operand.vmem [shape: f32[24,1], index: 6, kind: input, shape index: {}]
  %s7 = inlined_call_operand.vmem [shape: f32[24,1], index: 7, kind: input, shape index: {}]
  %s8 = inlined_call_operand.vmem [shape: bf16[8,24], index: 8, kind: input, shape index: {}]
  %s9 = inlined_call_operand.vmem [shape: f32[8,1], index: 9, kind: input, shape index: {}]
  %s10 = inlined_call_operand.vmem [shape: f32[8,1], index: 10, kind: input, shape index: {}]
  %s11 = inlined_call_operand.hbm [shape: f32[2,8,256], index: 11, kind: output, shape index: {}]
  %s12 = sld [smem:[#allocation0]]
  $region77: #{tpu_custom_call.1} parent=0
    _
  %s14 = ssub.s32 1, %s12
  %s15 = scalar_select 0, %s14, %s12
  $region1: #{tpu_custom_call.1} parent=0
    #allocation3 [shape = 'u8[16384]{0}', space=vmem, size = 0x4000, scoped, tag = 'output window, operand 0']
    #allocation4 [shape = 's32[2]{0}', space=sflag, size = 0x8, scoped, tag = 'scoped memory for tpu_custom_call.1']
    %16 = vsyncpa [#allocation4], 0
    %s17 = scalar_lea.sflag [#allocation4], 1
    %18 = vsyncpa %s17, 0
    loop: start=0, step=1, limit=4
    $region2: #{tpu_custom_call.1} parent=1 // loop_pre_header
      _
    $region3: #{tpu_custom_call.1} parent=1 // loop_header
      %s20 = sphi 0, %s24
      %p21 = scmp.ge.s32.totalorder %s20, 4
      %s30 = sphi 0, %s32
      %s33 = sphi 0, %s30
      %s34 = sphi 0, %s33
      %s50 = sphi 0, %s34
      %s54 = sphi 0, %s54
      %s56 = sphi 0, %s54
      %s57 = sphi 0, %s56
      %s71 = sphi 0, %s57
      %s75 = sphi 0, %s75
      %s77 = sphi 0, %s75
      %s78 = sphi 0, %s77
      %s92 = sphi 0, %s78
      %s96 = sphi 0, %s96
      %s98 = sphi 0, %s96
      %s99 = sphi 0, %s98
      %s113 = sphi 0, %s99
      %s117 = sphi 0, %s117
      %s119 = sphi 0, %s117
      %s120 = sphi 0, %s119
      %s134 = sphi 0, %s120
      %s138 = sphi 0, %s138
      %s140 = sphi 0, %s138
      %s141 = sphi 0, %s140
      %s155 = sphi 0, %s141
      %s159 = sphi 0, %s159
      %s161 = sphi 0, %s159
      %s162 = sphi 0, %s161
      %s176 = sphi 0, %s162
      %s180 = sphi 0, %s180
      %s182 = sphi 0, %s180
      %s183 = sphi 0, %s182
      %s197 = sphi 0, %s183
      %s201 = sphi 0, %s201
      %s203 = sphi 0, %s201
      %s204 = sphi 0, %s203
      %s218 = sphi 0, %s204
      %s222 = sphi 0, %s222
      %s224 = sphi 0, %s222
      %s225 = sphi 0, %s224
      %s239 = sphi 0, %s225
      %s243 = sphi 0, %s243
      %s245 = sphi 0, %s243
      %s246 = sphi 0, %s245
      %s260 = sphi 0, %s246
      %s266 = sphi 0, %s268
      %s269 = sphi 0, %s266
      %s270 = sphi 0, %s269
      %s286 = sphi 0, %s270
    $region4: #{tpu_custom_call.1} parent=1 // loop_header_branch
      %23 = sbr.rel (%p21) target = $region8
    $region5: #{tpu_custom_call.1} parent=1 // loop_body
      %s25 = ssub.s32 %s20, 1
      %s26 = ssub.s32 %s20, 2
      %s27 = sadd.s32 %s20, 1
      %s28 = ssub.s32 %s20, %s27
      %p29 = scmp.eq.s32.totalorder %s28, 0
      %s31 = sadd.s32 %s30, 1
      %s32 = scalar_select %p29, %s30, %s31
      %p35 = pneg %p29
      %p36 = scmp.eq.s32.totalorder %s20, 1
      %p37 = por %p35, %p36
      %p38 = scmp.ne.s32.totalorder %s30, %s33
      %p39 = scmp.eq.s32.totalorder %s20, 0
      %p40 = por %p38, %p39
      %p41 = scmp.ne.s32.totalorder %s30, %s33
      %p42 = scmp.eq.s32.totalorder %s25, 1
      %p43 = por %p41, %p42
      %p44 = scmp.ne.s32.totalorder %s33, %s34
      %p45 = scmp.eq.s32.totalorder %s25, 0
      %p46 = por %p44, %p45
      %p47 = scmp.ne.s32.totalorder %s33, %s34
      %p48 = scmp.eq.s32.totalorder %s26, 1
      %p49 = por %p47, %p48
      %p51 = scmp.ne.s32.totalorder %s34, %s50
      %p52 = scmp.eq.s32.totalorder %s26, 0
      %p53 = por %p51, %p52
      %s55 = sadd.s32 %s54, 1
      %p58 = scmp.eq.s32.totalorder %s20, 1
      %p59 = scmp.ne.s32.totalorder %s54, %s56
      %p60 = scmp.eq.s32.totalorder %s20, 0
      %p61 = por %p59, %p60
      %p62 = scmp.ne.s32.totalorder %s54, %s56
      %p63 = scmp.eq.s32.totalorder %s25, 1
      %p64 = por %p62, %p63
      %p65 = scmp.ne.s32.totalorder %s56, %s57
      %p66 = scmp.eq.s32.totalorder %s25, 0
      %p67 = por %p65, %p66
      %p68 = scmp.ne.s32.totalorder %s56, %s57
      %p69 = scmp.eq.s32.totalorder %s26, 1
      %p70 = por %p68, %p69
      %p72 = scmp.ne.s32.totalorder %s57, %s71
      %p73 = scmp.eq.s32.totalorder %s26, 0
      %p74 = por %p72, %p73
      %s76 = sadd.s32 %s75, 1
      %p79 = scmp.eq.s32.totalorder %s20, 1
      %p80 = scmp.ne.s32.totalorder %s75, %s77
      %p81 = scmp.eq.s32.totalorder %s20, 0
      %p82 = por %p80, %p81
      %p83 = scmp.ne.s32.totalorder %s75, %s77
      %p84 = scmp.eq.s32.totalorder %s25, 1
      %p85 = por %p83, %p84
      %p86 = scmp.ne.s32.totalorder %s77, %s78
      %p87 = scmp.eq.s32.totalorder %s25, 0
      %p88 = por %p86, %p87
      %p89 = scmp.ne.s32.totalorder %s77, %s78
      %p90 = scmp.eq.s32.totalorder %s26, 1
      %p91 = por %p89, %p90
      %p93 = scmp.ne.s32.totalorder %s78, %s92
      %p94 = scmp.eq.s32.totalorder %s26, 0
      %p95 = por %p93, %p94
      %s97 = sadd.s32 %s96, 1
      %p100 = scmp.eq.s32.totalorder %s20, 1
      %p101 = scmp.ne.s32.totalorder %s96, %s98
      %p102 = scmp.eq.s32.totalorder %s20, 0
      %p103 = por %p101, %p102
      %p104 = scmp.ne.s32.totalorder %s96, %s98
      %p105 = scmp.eq.s32.totalorder %s25, 1
      %p106 = por %p104, %p105
      %p107 = scmp.ne.s32.totalorder %s98, %s99
      %p108 = scmp.eq.s32.totalorder %s25, 0
      %p109 = por %p107, %p108
      %p110 = scmp.ne.s32.totalorder %s98, %s99
      %p111 = scmp.eq.s32.totalorder %s26, 1
      %p112 = por %p110, %p111
      %p114 = scmp.ne.s32.totalorder %s99, %s113
      %p115 = scmp.eq.s32.totalorder %s26, 0
      %p116 = por %p114, %p115
      %s118 = sadd.s32 %s117, 1
      %p121 = scmp.eq.s32.totalorder %s20, 1
      %p122 = scmp.ne.s32.totalorder %s117, %s119
      %p123 = scmp.eq.s32.totalorder %s20, 0
      %p124 = por %p122, %p123
      %p125 = scmp.ne.s32.totalorder %s117, %s119
      %p126 = scmp.eq.s32.totalorder %s25, 1
      %p127 = por %p125, %p126
      %p128 = scmp.ne.s32.totalorder %s119, %s120
      %p129 = scmp.eq.s32.totalorder %s25, 0
      %p130 = por %p128, %p129
      %p131 = scmp.ne.s32.totalorder %s119, %s120
      %p132 = scmp.eq.s32.totalorder %s26, 1
      %p133 = por %p131, %p132
      %p135 = scmp.ne.s32.totalorder %s120, %s134
      %p136 = scmp.eq.s32.totalorder %s26, 0
      %p137 = por %p135, %p136
      %s139 = sadd.s32 %s138, 1
      %p142 = scmp.eq.s32.totalorder %s20, 1
      %p143 = scmp.ne.s32.totalorder %s138, %s140
      %p144 = scmp.eq.s32.totalorder %s20, 0
      %p145 = por %p143, %p144
      %p146 = scmp.ne.s32.totalorder %s138, %s140
      %p147 = scmp.eq.s32.totalorder %s25, 1
      %p148 = por %p146, %p147
      %p149 = scmp.ne.s32.totalorder %s140, %s141
      %p150 = scmp.eq.s32.totalorder %s25, 0
      %p151 = por %p149, %p150
      %p152 = scmp.ne.s32.totalorder %s140, %s141
      %p153 = scmp.eq.s32.totalorder %s26, 1
      %p154 = por %p152, %p153
      %p156 = scmp.ne.s32.totalorder %s141, %s155
      %p157 = scmp.eq.s32.totalorder %s26, 0
      %p158 = por %p156, %p157
      %s160 = sadd.s32 %s159, 1
      %p163 = scmp.eq.s32.totalorder %s20, 1
      %p164 = scmp.ne.s32.totalorder %s159, %s161
      %p165 = scmp.eq.s32.totalorder %s20, 0
      %p166 = por %p164, %p165
      %p167 = scmp.ne.s32.totalorder %s159, %s161
      %p168 = scmp.eq.s32.totalorder %s25, 1
      %p169 = por %p167, %p168
      %p170 = scmp.ne.s32.totalorder %s161, %s162
      %p171 = scmp.eq.s32.totalorder %s25, 0
      %p172 = por %p170, %p171
      %p173 = scmp.ne.s32.totalorder %s161, %s162
      %p174 = scmp.eq.s32.totalorder %s26, 1
      %p175 = por %p173, %p174
      %p177 = scmp.ne.s32.totalorder %s162, %s176
      %p178 = scmp.eq.s32.totalorder %s26, 0
      %p179 = por %p177, %p178
      %s181 = sadd.s32 %s180, 1
      %p184 = scmp.eq.s32.totalorder %s20, 1
      %p185 = scmp.ne.s32.totalorder %s180, %s182
      %p186 = scmp.eq.s32.totalorder %s20, 0
      %p187 = por %p185, %p186
      %p188 = scmp.ne.s32.totalorder %s180, %s182
      %p189 = scmp.eq.s32.totalorder %s25, 1
      %p190 = por %p188, %p189
      %p191 = scmp.ne.s32.totalorder %s182, %s183
      %p192 = scmp.eq.s32.totalorder %s25, 0
      %p193 = por %p191, %p192
      %p194 = scmp.ne.s32.totalorder %s182, %s183
      %p195 = scmp.eq.s32.totalorder %s26, 1
      %p196 = por %p194, %p195
      %p198 = scmp.ne.s32.totalorder %s183, %s197
      %p199 = scmp.eq.s32.totalorder %s26, 0
      %p200 = por %p198, %p199
      %s202 = sadd.s32 %s201, 1
      %p205 = scmp.eq.s32.totalorder %s20, 1
      %p206 = scmp.ne.s32.totalorder %s201, %s203
      %p207 = scmp.eq.s32.totalorder %s20, 0
      %p208 = por %p206, %p207
      %p209 = scmp.ne.s32.totalorder %s201, %s203
      %p210 = scmp.eq.s32.totalorder %s25, 1
      %p211 = por %p209, %p210
      %p212 = scmp.ne.s32.totalorder %s203, %s204
      %p213 = scmp.eq.s32.totalorder %s25, 0
      %p214 = por %p212, %p213
      %p215 = scmp.ne.s32.totalorder %s203, %s204
      %p216 = scmp.eq.s32.totalorder %s26, 1
      %p217 = por %p215, %p216
      %p219 = scmp.ne.s32.totalorder %s204, %s218
      %p220 = scmp.eq.s32.totalorder %s26, 0
      %p221 = por %p219, %p220
      %s223 = sadd.s32 %s222, 1
      %p226 = scmp.eq.s32.totalorder %s20, 1
      %p227 = scmp.ne.s32.totalorder %s222, %s224
      %p228 = scmp.eq.s32.totalorder %s20, 0
      %p229 = por %p227, %p228
      %p230 = scmp.ne.s32.totalorder %s222, %s224
      %p231 = scmp.eq.s32.totalorder %s25, 1
      %p232 = por %p230, %p231
      %p233 = scmp.ne.s32.totalorder %s224, %s225
      %p234 = scmp.eq.s32.totalorder %s25, 0
      %p235 = por %p233, %p234
      %p236 = scmp.ne.s32.totalorder %s224, %s225
      %p237 = scmp.eq.s32.totalorder %s26, 1
      %p238 = por %p236, %p237
      %p240 = scmp.ne.s32.totalorder %s225, %s239
      %p241 = scmp.eq.s32.totalorder %s26, 0
      %p242 = por %p240, %p241
      %s244 = sadd.s32 %s243, 1
      %p247 = scmp.eq.s32.totalorder %s20, 1
      %p248 = scmp.ne.s32.totalorder %s243, %s245
      %p249 = scmp.eq.s32.totalorder %s20, 0
      %p250 = por %p248, %p249
      %p251 = scmp.ne.s32.totalorder %s243, %s245
      %p252 = scmp.eq.s32.totalorder %s25, 1
      %p253 = por %p251, %p252
      %p254 = scmp.ne.s32.totalorder %s245, %s246
      %p255 = scmp.eq.s32.totalorder %s25, 0
      %p256 = por %p254, %p255
      %p257 = scmp.ne.s32.totalorder %s245, %s246
      %p258 = scmp.eq.s32.totalorder %s26, 1
      %p259 = por %p257, %p258
      %p261 = scmp.ne.s32.totalorder %s246, %s260
      %p262 = scmp.eq.s32.totalorder %s26, 0
      %p263 = por %p261, %p262
      %s264 = ssub.s32 %s20, %s27
      %p265 = scmp.eq.s32.totalorder %s264, 0
      %s267 = sadd.s32 %s266, 1
      %s268 = scalar_select %p265, %s266, %s267
      %p271 = pneg %p265
      %p272 = scmp.eq.s32.totalorder %s20, 1
      %p273 = por %p271, %p272
      %p274 = scmp.ne.s32.totalorder %s266, %s269
      %p275 = scmp.eq.s32.totalorder %s20, 0
      %p276 = por %p274, %p275
      %p277 = scmp.ne.s32.totalorder %s266, %s269
      %p278 = scmp.eq.s32.totalorder %s25, 1
      %p279 = por %p277, %p278
      %p280 = scmp.ne.s32.totalorder %s269, %s270
      %p281 = scmp.eq.s32.totalorder %s25, 0
      %p282 = por %p280, %p281
      %p283 = scmp.ne.s32.totalorder %s269, %s270
      %p284 = scmp.eq.s32.totalorder %s26, 1
      %p285 = por %p283, %p284
      %p287 = scmp.ne.s32.totalorder %s270, %s286
      %p288 = scmp.eq.s32.totalorder %s26, 0
      %p289 = por %p287, %p288
      %p290 = scmp.le.s32.totalorder 1, %s20
      %p291 = scmp.lt.s32.totalorder %s20, 3
      %p292 = pnand %p290, %p291
      %p293 = pneg %p292
      // Predicated region
      $region9: #{tpu_custom_call.1} parent=5 // pred_check
        _
      $region10: #{tpu_custom_call.1} parent=5 // pred_check_branch
        %295 = sbr.rel (%p292) target = $region12
      $region11: #{tpu_custom_call.1} parent=5 // pred_region
        %s296 = ssub.s32 %s20, 1
        // Predicated region
        $region13: #{tpu_custom_call.1} parent=11 // pred_check
          %p297 = pneg %p67
        $region14: #{tpu_custom_call.1} parent=11 // pred_check_branch
          %299 = sbr.rel (%p297) target = $region16
        $region15: #{tpu_custom_call.1} parent=11 // pred_region
          _
        $region16: #{tpu_custom_call.1} parent=11 // pred_fallthru
          _
        // Predicated region
        $region17: #{tpu_custom_call.1} parent=11 // pred_check
          %p300 = pneg %p88
        $region18: #{tpu_custom_call.1} parent=11 // pred_check_branch
          %302 = sbr.rel (%p300) target = $region20
        $region19: #{tpu_custom_call.1} parent=11 // pred_region
          _
        $region20: #{tpu_custom_call.1} parent=11 // pred_fallthru
          _
        // Predicated region
        $region21: #{tpu_custom_call.1} parent=11 // pred_check
          %p303 = pneg %p109
        $region22: #{tpu_custom_call.1} parent=11 // pred_check_branch
          %305 = sbr.rel (%p303) target = $region24
        $region23: #{tpu_custom_call.1} parent=11 // pred_region
          _
        $region24: #{tpu_custom_call.1} parent=11 // pred_fallthru
          _
        // Predicated region
        $region25: #{tpu_custom_call.1} parent=11 // pred_check
          %p306 = pneg %p130
        $region26: #{tpu_custom_call.1} parent=11 // pred_check_branch
          %308 = sbr.rel (%p306) target = $region28
        $region27: #{tpu_custom_call.1} parent=11 // pred_region
          _
        $region28: #{tpu_custom_call.1} parent=11 // pred_fallthru
          _
        // Predicated region
        $region29: #{tpu_custom_call.1} parent=11 // pred_check
          %p309 = pneg %p151
        $region30: #{tpu_custom_call.1} parent=11 // pred_check_branch
          %311 = sbr.rel (%p309) target = $region32
        $region31: #{tpu_custom_call.1} parent=11 // pred_region
          _
        $region32: #{tpu_custom_call.1} parent=11 // pred_fallthru
          _
        // Predicated region
        $region33: #{tpu_custom_call.1} parent=11 // pred_check
          %p312 = pneg %p172
        $region34: #{tpu_custom_call.1} parent=11 // pred_check_branch
          %314 = sbr.rel (%p312) target = $region36
        $region35: #{tpu_custom_call.1} parent=11 // pred_region
          _
        $region36: #{tpu_custom_call.1} parent=11 // pred_fallthru
          _
        // Predicated region
        $region37: #{tpu_custom_call.1} parent=11 // pred_check
          %p315 = pneg %p193
        $region38: #{tpu_custom_call.1} parent=11 // pred_check_branch
          %317 = sbr.rel (%p315) target = $region40
        $region39: #{tpu_custom_call.1} parent=11 // pred_region
          _
        $region40: #{tpu_custom_call.1} parent=11 // pred_fallthru
          _
        // Predicated region
        $region41: #{tpu_custom_call.1} parent=11 // pred_check
          %p318 = pneg %p214
        $region42: #{tpu_custom_call.1} parent=11 // pred_check_branch
          %320 = sbr.rel (%p318) target = $region44
        $region43: #{tpu_custom_call.1} parent=11 // pred_region
          _
        $region44: #{tpu_custom_call.1} parent=11 // pred_fallthru
          _
        // Predicated region
        $region45: #{tpu_custom_call.1} parent=11 // pred_check
          %p321 = pneg %p235
        $region46: #{tpu_custom_call.1} parent=11 // pred_check_branch
          %323 = sbr.rel (%p321) target = $region48
        $region47: #{tpu_custom_call.1} parent=11 // pred_region
          _
        $region48: #{tpu_custom_call.1} parent=11 // pred_fallthru
          _
        // Predicated region
        $region49: #{tpu_custom_call.1} parent=11 // pred_check
          %p324 = pneg %p256
        $region50: #{tpu_custom_call.1} parent=11 // pred_check_branch
          %326 = sbr.rel (%p324) target = $region52
        $region51: #{tpu_custom_call.1} parent=11 // pred_region
          _
        $region52: #{tpu_custom_call.1} parent=11 // pred_fallthru
          _
      $region12: #{tpu_custom_call.1} parent=5 // pred_fallthru
        _
      %p327 = scmp.lt.s32.totalorder %s20, 2
      // Predicated region
      $region53: #{tpu_custom_call.1} parent=5 // pred_check
        %p328 = pneg %p327
      $region54: #{tpu_custom_call.1} parent=5 // pred_check_branch
        %330 = sbr.rel (%p328) target = $region56
      $region55: #{tpu_custom_call.1} parent=5 // pred_region
        // Predicated region
        $region57: #{tpu_custom_call.1} parent=55 // pred_check
          %p331 = pneg %p40
        $region58: #{tpu_custom_call.1} parent=55 // pred_check_branch
          %333 = sbr.rel (%p331) target = $region60
        $region59: #{tpu_custom_call.1} parent=55 // pred_region
          %p334 = scmp.lt.s32.totalorder %s20, 1
          %s335 = scalar_select %p334, %s20, 1
          %s336 = smul.addr %s335, 2
          %s337 = smul.addr %s336, 8
          %s338 = scalar_lea.vmem %s0, %s337
        $region60: #{tpu_custom_call.1} parent=55 // pred_fallthru
          _
      $region56: #{tpu_custom_call.1} parent=5 // pred_fallthru
        _
      %p339 = scmp.le.s32.totalorder 1, %s20
      %p340 = scmp.lt.s32.totalorder %s20, 3
      %p341 = pnand %p339, %p340
      %p342 = pneg %p341
      // Predicated region
      $region61: #{tpu_custom_call.1} parent=5 // pred_check
        _
      $region62: #{tpu_custom_call.1} parent=5 // pred_check_branch
        %344 = sbr.rel (%p341) target = $region64
      $region63: #{tpu_custom_call.1} parent=5 // pred_region
        %s345 = ssub.s32 %s20, 1
        %p346 = scmp.lt.s32.totalorder %s25, 1
        %s347 = scalar_select %p346, %s25, 1
        %s348 = smul.addr %s347, 2
        %s349 = smul.addr %s348, 8
        %s350 = scalar_lea.vmem %s0, %s349
        %p351 = pneg %p46
        %p352 = pneg %p43
        %p353 = pneg %p67
        %p354 = pneg %p64
        %p355 = pneg %p88
        %p356 = pneg %p85
        %p357 = pneg %p109
        %p358 = pneg %p106
        %p359 = pneg %p130
        %p360 = pneg %p127
        %p361 = pneg %p151
        %p362 = pneg %p148
        %p363 = pneg %p172
        %p364 = pneg %p169
        %p365 = pneg %p193
        %p366 = pneg %p190
        %p367 = pneg %p214
        %p368 = pneg %p211
        %p369 = pneg %p235
        %p370 = pneg %p232
        %p371 = pneg %p256
        %p372 = pneg %p253
        %p373 = pneg %p282
        %p374 = pneg %p279
        %s375 = sand.u32 %s269, 1
        %s376 = scalar_lea.sflag [#allocation4], %s375
        %s377 = sand.u32 %s269, 1
        %s378 = smul.addr %s377, 16
        %s379 = scalar_lea.vmem [#allocation3], %s378
        %p380 = scmp.lt.s32.totalorder %s25, 1
        %s381 = scalar_select %p380, %s25, 1
        %s382 = smul.addr %s381, 2
        %s383 = smul.addr %s382, 8
        %s384 = scalar_lea.vmem %s0, %s383
        %v386 = vld [vmem:[%s384] sm:$0xff]
        %v387 = vld [vmem:[%s384 + $0x8] sm:$0xff]
        %v388 = vld [vmem:[%s1] sm:$0xf]
        %v389 = vld [vmem:[%s1 + $0x4] sm:$0xf]
        %v390 = vld [vmem:[%s1 + $0x8] sm:$0xf]
        %v391 = vpack.c.bf16 %v386, %v386
        %v392 = vpack.c.bf16 %v387, %v387
        %v396 = vunpack.c.l.b16 %v388
        %v397 = vunpack.c.l.b16 %v389
        %v398 = vunpack.c.l.b16 %v390
        %v399 = vpack.c.b16 %v397, %v396
        %v400 = vpack.c.b16 %v398, %v398
        %vm401 = vcmask 64512
        %v403 = vsel %vm401, %v399, 0
        %v406 = vsel %vm401, %v400, 0
        %vm408 = vcmask 1043456
        %v410 = vsel %vm408, %v391, 0
        %v413 = vsel %vm408, %v392, 0
        %415 = vmatpush.bf16.msra.mxu0 0
        %416 = vmatpush.bf16.msra.mxu0 0
        %417 = vmatpush.bf16.msra.mxu0 0
        %418 = vmatpush.bf16.msra.mxu0 0
        %419 = vmatpush.bf16.msra.mxu0 0
        %420 = vmatpush.bf16.msra.mxu0 0
        %421 = vmatpush.bf16.msra.mxu0 0
        %422 = vmatpush.bf16.msra.mxu0 %v410
        %423 = vmatmul.bf16.gmra.mxu0 %v403
        %v424 = vpop.f32.mrf.mxu0
        %v425 = vadd.f32 0.0, %v424
        %v426 = vpop.f32.mrf.mxu0
        %v427 = vadd.f32 0.0, %v426
        %428 = vmatmul.bf16.gmra.mxu0 %v406
        %v429 = vpop.f32.mrf.mxu0
        %v430 = vadd.f32 0.0, %v429
        %v431 = vpop.f32.mrf.mxu0
        %432 = vdwg.mxu0
        %433 = vmatpush.bf16.msra.mxu0 0
        %434 = vmatpush.bf16.msra.mxu0 0
        %435 = vmatpush.bf16.msra.mxu0 0
        %436 = vmatpush.bf16.msra.mxu0 0
        %437 = vmatpush.bf16.msra.mxu0 0
        %438 = vmatpush.bf16.msra.mxu0 0
        %439 = vmatpush.bf16.msra.mxu0 0
        %440 = vmatpush.bf16.msra.mxu0 %v413
        %441 = vmatmul.bf16.gmra.mxu0 %v403
        %v442 = vpop.f32.mrf.mxu0
        %v443 = vadd.f32 0.0, %v442
        %v444 = vpop.f32.mrf.mxu0
        %v445 = vadd.f32 0.0, %v444
        %446 = vmatmul.bf16.gmra.mxu0 %v406
        %v447 = vpop.f32.mrf.mxu0
        %v448 = vadd.f32 0.0, %v447
        %v449 = vpop.f32.mrf.mxu0
        %450 = vdwg.mxu0
        %v451 = vld [vmem:[%s2] sm:$0xff]
        %v452 = vld [vmem:[%s2 + $0x8] sm:$0xff]
        %v453 = vld [vmem:[%s2 + $0x10] sm:$0xff]
        %455 = vset.pattern.permute.xlu0 0
        %456 = vperm.xlu0 %455, %v451
        %v457 = vpop.permute.xlu0 %456
        %460 = vset.pattern.permute.xlu0 0
        %461 = vperm.xlu0 %460, %v452
        %v462 = vpop.permute.xlu0 %461
        %465 = vset.pattern.permute.xlu0 0
        %466 = vperm.xlu0 %465, %v453
        %v467 = vpop.permute.xlu0 %466
        %v469 = vmul.f32 %v425, %v457
        %v470 = vmul.f32 %v443, %v457
        %v471 = vmul.f32 %v427, %v462
        %v472 = vmul.f32 %v445, %v462
        %v473 = vmul.f32 %v430, %v467
        %v474 = vmul.f32 %v448, %v467
        %v475 = vld [vmem:[%s3] sm:$0xff]
        %v476 = vld [vmem:[%s3 + $0x8] sm:$0xff]
        %v477 = vld [vmem:[%s3 + $0x10] sm:$0xff]
        %479 = vset.pattern.permute.xlu0 0
        %480 = vperm.xlu0 %479, %v475
        %v481 = vpop.permute.xlu0 %480
        %484 = vset.pattern.permute.xlu0 0
        %485 = vperm.xlu0 %484, %v476
        %v486 = vpop.permute.xlu0 %485
        %489 = vset.pattern.permute.xlu0 0
        %490 = vperm.xlu0 %489, %v477
        %v491 = vpop.permute.xlu0 %490
        %v493 = vadd.f32 %v469, %v481
        %v494 = vadd.f32 %v470, %v481
        %v495 = vadd.f32 %v471, %v486
        %v496 = vadd.f32 %v472, %v486
        %v497 = vadd.f32 %v473, %v491
        %v498 = vadd.f32 %v474, %v491
        %v499 = vmax.f32 %v493, 0.0
        %v500 = vmax.f32 %v494, 0.0
        %v501 = vmax.f32 %v495, 0.0
        %v502 = vmax.f32 %v496, 0.0
        %v503 = vmax.f32 %v497, 0.0
        %v504 = vmax.f32 %v498, 0.0
        %vm505 = vcmask 1048440
        %506 = vst.msk [vmem:[#allocation2] sm:$0xff] %vm505, 0.0
        %507 = vst.msk [vmem:[#allocation2 + $0x20] sm:$0xff] %vm505, 0.0
        %508 = vst.msk [vmem:[#allocation2 + $0x40] sm:$0xff] %vm505, 0.0
        %vm509 = vcmask 138240
        %510 = vst.msk [vmem:[#allocation2 + $0x18] sm:$0xff] %vm509, 0.0
        %511 = vst.msk [vmem:[#allocation2 + $0x38] sm:$0xff] %vm509, 0.0
        %512 = vst.msk [vmem:[#allocation2 + $0x58] sm:$0xff] %vm509, 0.0
        %513 = vst [vmem:[#allocation2 + $0x8] sm:$0xff] %v499
        %514 = vst [vmem:[#allocation2 + $0x10] sm:$0xff] %v500
        %515 = vst [vmem:[#allocation2 + $0x28] sm:$0xff] %v501
        %516 = vst [vmem:[#allocation2 + $0x30] sm:$0xff] %v502
        %517 = vst [vmem:[#allocation2 + $0x48] sm:$0xff] %v503
        %518 = vst [vmem:[#allocation2 + $0x50] sm:$0xff] %v504
        %v519 = vld [vmem:[%s4] sm:$0xff]
        %v520 = vld [vmem:[%s4 + $0x8] sm:$0xff]
        %v521 = vld [vmem:[%s4 + $0x10] sm:$0xff]
        %s522 = scalar_lea.vmem %s4, 24
        %v523 = vld [vmem:[%s522] sm:$0xff]
        %v524 = vld [vmem:[%s522 + $0x8] sm:$0xff]
        %v525 = vld [vmem:[%s522 + $0x10] sm:$0xff]
        %s526 = scalar_lea.vmem %s4, 48
        %v527 = vld [vmem:[%s526] sm:$0xff]
        %v528 = vld [vmem:[%s526 + $0x8] sm:$0xff]
        %v529 = vld [vmem:[%s526 + $0x10] sm:$0xff]
        %s530 = scalar_lea.vmem %s4, 72
        %v531 = vld [vmem:[%s530] sm:$0xff]
        %v532 = vld [vmem:[%s530 + $0x8] sm:$0xff]
        %v533 = vld [vmem:[%s530 + $0x10] sm:$0xff]
        %s534 = scalar_lea.vmem %s4, 96
        %v535 = vld [vmem:[%s534] sm:$0xff]
        %v536 = vld [vmem:[%s534 + $0x8] sm:$0xff]
        %v537 = vld [vmem:[%s534 + $0x10] sm:$0xff]
        %s538 = scalar_lea.vmem %s4, 120
        %v539 = vld [vmem:[%s538] sm:$0xff]
        %v540 = vld [vmem:[%s538 + $0x8] sm:$0xff]
        %v541 = vld [vmem:[%s538 + $0x10] sm:$0xff]
        %s542 = scalar_lea.vmem %s4, 144
        %v543 = vld [vmem:[%s542] sm:$0xff]
        %v544 = vld [vmem:[%s542 + $0x8] sm:$0xff]
        %v545 = vld [vmem:[%s542 + $0x10] sm:$0xff]
        %s546 = scalar_lea.vmem %s4, 168
        %v547 = vld [vmem:[%s546] sm:$0xff]
        %v548 = vld [vmem:[%s546 + $0x8] sm:$0xff]
        %v549 = vld [vmem:[%s546 + $0x10] sm:$0xff]
        %s550 = scalar_lea.vmem %s4, 192
        %v551 = vld [vmem:[%s550] sm:$0xff]
        %v552 = vld [vmem:[%s550 + $0x8] sm:$0xff]
        %v553 = vld [vmem:[%s550 + $0x10] sm:$0xff]
        %v554 = vld [vmem:[#allocation2] sm:$0xff]
        %v555 = vld [vmem:[#allocation2 + $0x8] sm:$0xff]
        %v556 = vld [vmem:[#allocation2 + $0x10] sm:$0xff]
        %v557 = vld [vmem:[#allocation2 + $0x20] sm:$0xff]
        %v558 = vld [vmem:[#allocation2 + $0x28] sm:$0xff]
        %v559 = vld [vmem:[#allocation2 + $0x30] sm:$0xff]
        %v560 = vld [vmem:[#allocation2 + $0x40] sm:$0xff]
        %v561 = vld [vmem:[#allocation2 + $0x48] sm:$0xff]
        %v562 = vld [vmem:[#allocation2 + $0x50] sm:$0xff]
        %564 = vset.pattern.permute.xlu0 0
        %565 = vperm.xlu0 %564, %v519
        %v566 = vpop.permute.xlu0 %565
        %569 = vset.pattern.permute.xlu0 0
        %570 = vperm.xlu0 %569, %v520
        %v571 = vpop.permute.xlu0 %570
        %574 = vset.pattern.permute.xlu0 0
        %575 = vperm.xlu0 %574, %v521
        %v576 = vpop.permute.xlu0 %575
        %v578 = vmul.f32 %v554, %v566
        %v579 = vmul.f32 %v555, %v566
        %v580 = vmul.f32 %v556, %v566
        %v581 = vmul.f32 %v557, %v571
        %v582 = vmul.f32 %v558, %v571
        %v583 = vmul.f32 %v559, %v571
        %v584 = vmul.f32 %v560, %v576
        %v585 = vmul.f32 %v561, %v576
        %v586 = vmul.f32 %v562, %v576
        %588 = vset.pattern.permute.xlu0 0
        %589 = vperm.xlu0 %588, %v531
        %v590 = vpop.permute.xlu0 %589
        %593 = vset.pattern.permute.xlu0 0
        %594 = vperm.xlu0 %593, %v532
        %v595 = vpop.permute.xlu0 %594
        %598 = vset.pattern.permute.xlu0 0
        %599 = vperm.xlu0 %598, %v533
        %v600 = vpop.permute.xlu0 %599
        %v602 = vmul.f32 %v554, %v590
        %v603 = vmul.f32 %v555, %v590
        %v604 = vmul.f32 %v556, %v590
        %v605 = vmul.f32 %v557, %v595
        %v606 = vmul.f32 %v558, %v595
        %v607 = vmul.f32 %v559, %v595
        %v608 = vmul.f32 %v560, %v600
        %v609 = vmul.f32 %v561, %v600
        %v610 = vmul.f32 %v562, %v600
        %620 = vrot.lane.b32.xlu0 %v602, 112
        %v621 = vpop.permute.xlu0 %620
        %622 = vrot.lane.b32.xlu0 %v603, 112
        %v623 = vpop.permute.xlu0 %622
        %624 = vrot.lane.b32.xlu0 %v604, 112
        %v625 = vpop.permute.xlu0 %624
        %626 = vrot.lane.b32.xlu0 %v605, 112
        %v627 = vpop.permute.xlu0 %626
        %628 = vrot.lane.b32.xlu0 %v606, 112
        %v629 = vpop.permute.xlu0 %628
        %630 = vrot.lane.b32.xlu0 %v607, 112
        %v631 = vpop.permute.xlu0 %630
        %632 = vrot.lane.b32.xlu0 %v608, 112
        %v633 = vpop.permute.xlu0 %632
        %634 = vrot.lane.b32.xlu0 %v609, 112
        %v635 = vpop.permute.xlu0 %634
        %636 = vrot.lane.b32.xlu0 %v610, 112
        %v637 = vpop.permute.xlu0 %636
        %vm638 = vcmask 916480
        %v639 = vsel %vm638, %v621, %v623
        %v640 = vsel %vm638, %v623, %v625
        %v641 = vsel %vm638, %v627, %v629
        %v642 = vsel %vm638, %v629, %v631
        %v643 = vsel %vm638, %v633, %v635
        %v644 = vsel %vm638, %v635, %v637
        %v654 = vadd.f32 %v578, %v639
        %v655 = vadd.f32 %v579, %v640
        %v656 = vadd.f32 %v580, %v625
        %v657 = vadd.f32 %v581, %v641
        %v658 = vadd.f32 %v582, %v642
        %v659 = vadd.f32 %v583, %v631
        %v660 = vadd.f32 %v584, %v643
        %v661 = vadd.f32 %v585, %v644
        %v662 = vadd.f32 %v586, %v637
        %v663 = vld [vmem:[#allocation2 + $0x8] sm:$0xff]
        %v664 = vld [vmem:[#allocation2 + $0x10] sm:$0xff]
        %v665 = vld [vmem:[#allocation2 + $0x18] sm:$0xff]
        %v666 = vld [vmem:[#allocation2 + $0x28] sm:$0xff]
        %v667 = vld [vmem:[#allocation2 + $0x30] sm:$0xff]
        %v668 = vld [vmem:[#allocation2 + $0x38] sm:$0xff]
        %v669 = vld [vmem:[#allocation2 + $0x48] sm:$0xff]
        %v670 = vld [vmem:[#allocation2 + $0x50] sm:$0xff]
        %v671 = vld [vmem:[#allocation2 + $0x58] sm:$0xff]
        %673 = vset.pattern.permute.xlu0 0
        %674 = vperm.xlu0 %673, %v543
        %v675 = vpop.permute.xlu0 %674
        %678 = vset.pattern.permute.xlu0 0
        %679 = vperm.xlu0 %678, %v544
        %v680 = vpop.permute.xlu0 %679
        %683 = vset.pattern.permute.xlu0 0
        %684 = vperm.xlu0 %683, %v545
        %v685 = vpop.permute.xlu0 %684
        %v687 = vmul.f32 %v663, %v675
        %v688 = vmul.f32 %v664, %v675
        %v689 = vmul.f32 %v665, %v675
        %v690 = vmul.f32 %v666, %v680
        %v691 = vmul.f32 %v667, %v680
        %v692 = vmul.f32 %v668, %v680
        %v693 = vmul.f32 %v669, %v685
        %v694 = vmul.f32 %v670, %v685
        %v695 = vmul.f32 %v671, %v685
        %705 = vrot.lane.b32.xlu0 %v687, 96
        %v706 = vpop.permute.xlu0 %705
        %707 = vrot.lane.b32.xlu0 %v688, 96
        %v708 = vpop.permute.xlu0 %707
        %709 = vrot.lane.b32.xlu0 %v689, 96
        %v710 = vpop.permute.xlu0 %709
        %711 = vrot.lane.b32.xlu0 %v690, 96
        %v712 = vpop.permute.xlu0 %711
        %713 = vrot.lane.b32.xlu0 %v691, 96
        %v714 = vpop.permute.xlu0 %713
        %715 = vrot.lane.b32.xlu0 %v692, 96
        %v716 = vpop.permute.xlu0 %715
        %717 = vrot.lane.b32.xlu0 %v693, 96
        %v718 = vpop.permute.xlu0 %717
        %719 = vrot.lane.b32.xlu0 %v694, 96
        %v720 = vpop.permute.xlu0 %719
        %721 = vrot.lane.b32.xlu0 %v695, 96
        %v722 = vpop.permute.xlu0 %721
        %vm723 = vcmask 785408
        %v724 = vsel %vm723, %v706, %v708
        %v725 = vsel %vm723, %v708, %v710
        %v726 = vsel %vm723, %v712, %v714
        %v727 = vsel %vm723, %v714, %v716
        %v728 = vsel %vm723, %v718, %v720
        %v729 = vsel %vm723, %v720, %v722
        %v739 = vadd.f32 %v654, %v706
        %v740 = vadd.f32 %v655, %v724
        %v741 = vadd.f32 %v656, %v725
        %v742 = vadd.f32 %v657, %v712
        %v743 = vadd.f32 %v658, %v726
        %v744 = vadd.f32 %v659, %v727
        %v745 = vadd.f32 %v660, %v718
        %v746 = vadd.f32 %v661, %v728
        %v747 = vadd.f32 %v662, %v729
        %v748 = vld [vmem:[%s5] ss:$4 sm:$0x3]
        %v750 = vperm.slane %v748, 0
        %v751 = vperm.slane %v748, 1
        %752 = vrot.lane.b32.xlu0 %v750, 111
        %v753 = vpop.permute.xlu0 %752
        %754 = vrot.lane.b32.xlu0 %v751, 111
        %v755 = vpop.permute.xlu0 %754
        %vm756 = vcmask 908288
        %v757 = vsel %vm756, %v753, %v755
        %v761 = vmul.f32 %v739, %v753
        %v762 = vmul.f32 %v740, %v757
        %v763 = vmul.f32 %v741, %v755
        %v764 = vmul.f32 %v742, %v753
        %v765 = vmul.f32 %v743, %v757
        %v766 = vmul.f32 %v744, %v755
        %v767 = vmul.f32 %v745, %v753
        %v768 = vmul.f32 %v746, %v757
        %v769 = vmul.f32 %v747, %v755
        %771 = vset.pattern.permute.xlu0 0
        %772 = vperm.xlu0 %771, %v523
        %v773 = vpop.permute.xlu0 %772
        %776 = vset.pattern.permute.xlu0 0
        %777 = vperm.xlu0 %776, %v524
        %v778 = vpop.permute.xlu0 %777
        %781 = vset.pattern.permute.xlu0 0
        %782 = vperm.xlu0 %781, %v525
        %v783 = vpop.permute.xlu0 %782
        %v785 = vmul.f32 %v554, %v773
        %v786 = vmul.f32 %v555, %v773
        %v787 = vmul.f32 %v556, %v773
        %v788 = vmul.f32 %v557, %v778
        %v789 = vmul.f32 %v558, %v778
        %v790 = vmul.f32 %v559, %v778
        %v791 = vmul.f32 %v560, %v783
        %v792 = vmul.f32 %v561, %v783
        %v793 = vmul.f32 %v562, %v783
        %795 = vset.pattern.permute.xlu0 0
        %796 = vperm.xlu0 %795, %v535
        %v797 = vpop.permute.xlu0 %796
        %800 = vset.pattern.permute.xlu0 0
        %801 = vperm.xlu0 %800, %v536
        %v802 = vpop.permute.xlu0 %801
        %805 = vset.pattern.permute.xlu0 0
        %806 = vperm.xlu0 %805, %v537
        %v807 = vpop.permute.xlu0 %806
        %v809 = vmul.f32 %v555, %v797
        %v810 = vmul.f32 %v556, %v797
        %v811 = vmul.f32 %v558, %v802
        %v812 = vmul.f32 %v559, %v802
        %v813 = vmul.f32 %v561, %v807
        %v814 = vmul.f32 %v562, %v807
        %821 = vrot.lane.b32.xlu0 %v809, 112
        %v822 = vpop.permute.xlu0 %821
        %823 = vrot.lane.b32.xlu0 %v810, 112
        %v824 = vpop.permute.xlu0 %823
        %825 = vrot.lane.b32.xlu0 %v811, 112
        %v826 = vpop.permute.xlu0 %825
        %827 = vrot.lane.b32.xlu0 %v812, 112
        %v828 = vpop.permute.xlu0 %827
        %829 = vrot.lane.b32.xlu0 %v813, 112
        %v830 = vpop.permute.xlu0 %829
        %831 = vrot.lane.b32.xlu0 %v814, 112
        %v832 = vpop.permute.xlu0 %831
        %v833 = vsel %vm638, %v822, %v824
        %v834 = vsel %vm638, %v826, %v828
        %v835 = vsel %vm638, %v830, %v832
        %v845 = vadd.f32 %v785, %v822
        %v846 = vadd.f32 %v786, %v833
        %v847 = vadd.f32 %v787, %v824
        %v848 = vadd.f32 %v788, %v826
        %v849 = vadd.f32 %v789, %v834
        %v850 = vadd.f32 %v790, %v828
        %v851 = vadd.f32 %v791, %v830
        %v852 = vadd.f32 %v792, %v835
        %v853 = vadd.f32 %v793, %v832
        %855 = vset.pattern.permute.xlu0 0
        %856 = vperm.xlu0 %855, %v547
        %v857 = vpop.permute.xlu0 %856
        %860 = vset.pattern.permute.xlu0 0
        %861 = vperm.xlu0 %860, %v548
        %v862 = vpop.permute.xlu0 %861
        %865 = vset.pattern.permute.xlu0 0
        %866 = vperm.xlu0 %865, %v549
        %v867 = vpop.permute.xlu0 %866
        %v869 = vmul.f32 %v663, %v857
        %v870 = vmul.f32 %v664, %v857
        %v871 = vmul.f32 %v665, %v857
        %v872 = vmul.f32 %v666, %v862
        %v873 = vmul.f32 %v667, %v862
        %v874 = vmul.f32 %v668, %v862
        %v875 = vmul.f32 %v669, %v867
        %v876 = vmul.f32 %v670, %v867
        %v877 = vmul.f32 %v671, %v867
        %887 = vrot.lane.b32.xlu0 %v869, 96
        %v888 = vpop.permute.xlu0 %887
        %889 = vrot.lane.b32.xlu0 %v870, 96
        %v890 = vpop.permute.xlu0 %889
        %891 = vrot.lane.b32.xlu0 %v871, 96
        %v892 = vpop.permute.xlu0 %891
        %893 = vrot.lane.b32.xlu0 %v872, 96
        %v894 = vpop.permute.xlu0 %893
        %895 = vrot.lane.b32.xlu0 %v873, 96
        %v896 = vpop.permute.xlu0 %895
        %897 = vrot.lane.b32.xlu0 %v874, 96
        %v898 = vpop.permute.xlu0 %897
        %899 = vrot.lane.b32.xlu0 %v875, 96
        %v900 = vpop.permute.xlu0 %899
        %901 = vrot.lane.b32.xlu0 %v876, 96
        %v902 = vpop.permute.xlu0 %901
        %903 = vrot.lane.b32.xlu0 %v877, 96
        %v904 = vpop.permute.xlu0 %903
        %v905 = vsel %vm723, %v888, %v890
        %v906 = vsel %vm723, %v890, %v892
        %v907 = vsel %vm723, %v894, %v896
        %v908 = vsel %vm723, %v896, %v898
        %v909 = vsel %vm723, %v900, %v902
        %v910 = vsel %vm723, %v902, %v904
        %v920 = vadd.f32 %v845, %v888
        %v921 = vadd.f32 %v846, %v905
        %v922 = vadd.f32 %v847, %v906
        %v923 = vadd.f32 %v848, %v894
        %v924 = vadd.f32 %v849, %v907
        %v925 = vadd.f32 %v850, %v908
        %v926 = vadd.f32 %v851, %v900
        %v927 = vadd.f32 %v852, %v909
        %v928 = vadd.f32 %v853, %v910
        %938 = vrot.lane.b32.xlu0 %v920, 127
        %v939 = vpop.permute.xlu0 %938
        %940 = vrot.lane.b32.xlu0 %v921, 127
        %v941 = vpop.permute.xlu0 %940
        %942 = vrot.lane.b32.xlu0 %v922, 127
        %v943 = vpop.permute.xlu0 %942
        %944 = vrot.lane.b32.xlu0 %v923, 127
        %v945 = vpop.permute.xlu0 %944
        %946 = vrot.lane.b32.xlu0 %v924, 127
        %v947 = vpop.permute.xlu0 %946
        %948 = vrot.lane.b32.xlu0 %v925, 127
        %v949 = vpop.permute.xlu0 %948
        %950 = vrot.lane.b32.xlu0 %v926, 127
        %v951 = vpop.permute.xlu0 %950
        %952 = vrot.lane.b32.xlu0 %v927, 127
        %v953 = vpop.permute.xlu0 %952
        %954 = vrot.lane.b32.xlu0 %v928, 127
        %v955 = vpop.permute.xlu0 %954
        %vm956 = vcmask 1039360
        %v957 = vsel %vm956, %v939, %v941
        %v958 = vsel %vm956, %v941, %v943
        %v959 = vsel %vm956, %v945, %v947
        %v960 = vsel %vm956, %v947, %v949
        %v961 = vsel %vm956, %v951, %v953
        %v962 = vsel %vm956, %v953, %v955
        %v972 = vadd.f32 %v761, %v957
        %v973 = vadd.f32 %v762, %v958
        %v974 = vadd.f32 %v763, %v943
        %v975 = vadd.f32 %v764, %v959
        %v976 = vadd.f32 %v765, %v960
        %v977 = vadd.f32 %v766, %v949
        %v978 = vadd.f32 %v767, %v961
        %v979 = vadd.f32 %v768, %v962
        %v980 = vadd.f32 %v769, %v955
        %982 = vset.pattern.permute.xlu0 0
        %983 = vperm.xlu0 %982, %v527
        %v984 = vpop.permute.xlu0 %983
        %987 = vset.pattern.permute.xlu0 0
        %988 = vperm.xlu0 %987, %v528
        %v989 = vpop.permute.xlu0 %988
        %992 = vset.pattern.permute.xlu0 0
        %993 = vperm.xlu0 %992, %v529
        %v994 = vpop.permute.xlu0 %993
        %v996 = vmul.f32 %v554, %v984
        %v997 = vmul.f32 %v555, %v984
        %v998 = vmul.f32 %v556, %v984
        %v999 = vmul.f32 %v557, %v989
        %v1000 = vmul.f32 %v558, %v989
        %v1001 = vmul.f32 %v559, %v989
        %v1002 = vmul.f32 %v560, %v994
        %v1003 = vmul.f32 %v561, %v994
        %v1004 = vmul.f32 %v562, %v994
        %1006 = vset.pattern.permute.xlu0 0
        %1007 = vperm.xlu0 %1006, %v539
        %v1008 = vpop.permute.xlu0 %1007
        %1011 = vset.pattern.permute.xlu0 0
        %1012 = vperm.xlu0 %1011, %v540
        %v1013 = vpop.permute.xlu0 %1012
        %1016 = vset.pattern.permute.xlu0 0
        %1017 = vperm.xlu0 %1016, %v541
        %v1018 = vpop.permute.xlu0 %1017
        %v1020 = vmul.f32 %v663, %v1008
        %v1021 = vmul.f32 %v664, %v1008
        %v1022 = vmul.f32 %v665, %v1008
        %v1023 = vmul.f32 %v666, %v1013
        %v1024 = vmul.f32 %v667, %v1013
        %v1025 = vmul.f32 %v668, %v1013
        %v1026 = vmul.f32 %v669, %v1018
        %v1027 = vmul.f32 %v670, %v1018
        %v1028 = vmul.f32 %v671, %v1018
        %1038 = vrot.lane.b32.xlu0 %v1020, 112
        %v1039 = vpop.permute.xlu0 %1038
        %1040 = vrot.lane.b32.xlu0 %v1021, 112
        %v1041 = vpop.permute.xlu0 %1040
        %1042 = vrot.lane.b32.xlu0 %v1022, 112
        %v1043 = vpop.permute.xlu0 %1042
        %1044 = vrot.lane.b32.xlu0 %v1023, 112
        %v1045 = vpop.permute.xlu0 %1044
        %1046 = vrot.lane.b32.xlu0 %v1024, 112
        %v1047 = vpop.permute.xlu0 %1046
        %1048 = vrot.lane.b32.xlu0 %v1025, 112
        %v1049 = vpop.permute.xlu0 %1048
        %1050 = vrot.lane.b32.xlu0 %v1026, 112
        %v1051 = vpop.permute.xlu0 %1050
        %1052 = vrot.lane.b32.xlu0 %v1027, 112
        %v1053 = vpop.permute.xlu0 %1052
        %1054 = vrot.lane.b32.xlu0 %v1028, 112
        %v1055 = vpop.permute.xlu0 %1054
        %v1056 = vsel %vm638, %v1039, %v1041
        %v1057 = vsel %vm638, %v1041, %v1043
        %v1058 = vsel %vm638, %v1045, %v1047
        %v1059 = vsel %vm638, %v1047, %v1049
        %v1060 = vsel %vm638, %v1051, %v1053
        %v1061 = vsel %vm638, %v1053, %v1055
        %v1071 = vadd.f32 %v996, %v1039
        %v1072 = vadd.f32 %v997, %v1056
        %v1073 = vadd.f32 %v998, %v1057
        %v1074 = vadd.f32 %v999, %v1045
        %v1075 = vadd.f32 %v1000, %v1058
        %v1076 = vadd.f32 %v1001, %v1059
        %v1077 = vadd.f32 %v1002, %v1051
        %v1078 = vadd.f32 %v1003, %v1060
        %v1079 = vadd.f32 %v1004, %v1061
        %1081 = vset.pattern.permute.xlu0 0
        %1082 = vperm.xlu0 %1081, %v551
        %v1083 = vpop.permute.xlu0 %1082
        %1086 = vset.pattern.permute.xlu0 0
        %1087 = vperm.xlu0 %1086, %v552
        %v1088 = vpop.permute.xlu0 %1087
        %1091 = vset.pattern.permute.xlu0 0
        %1092 = vperm.xlu0 %1091, %v553
        %v1093 = vpop.permute.xlu0 %1092
        %v1095 = vmul.f32 %v663, %v1083
        %v1096 = vmul.f32 %v664, %v1083
        %v1097 = vmul.f32 %v665, %v1083
        %v1098 = vmul.f32 %v666, %v1088
        %v1099 = vmul.f32 %v667, %v1088
        %v1100 = vmul.f32 %v668, %v1088
        %v1101 = vmul.f32 %v669, %v1093
        %v1102 = vmul.f32 %v670, %v1093
        %v1103 = vmul.f32 %v671, %v1093
        %1113 = vrot.lane.b32.xlu0 %v1095, 96
        %v1114 = vpop.permute.xlu0 %1113
        %1115 = vrot.lane.b32.xlu0 %v1096, 96
        %v1116 = vpop.permute.xlu0 %1115
        %1117 = vrot.lane.b32.xlu0 %v1097, 96
        %v1118 = vpop.permute.xlu0 %1117
        %1119 = vrot.lane.b32.xlu0 %v1098, 96
        %v1120 = vpop.permute.xlu0 %1119
        %1121 = vrot.lane.b32.xlu0 %v1099, 96
        %v1122 = vpop.permute.xlu0 %1121
        %1123 = vrot.lane.b32.xlu0 %v1100, 96
        %v1124 = vpop.permute.xlu0 %1123
        %1125 = vrot.lane.b32.xlu0 %v1101, 96
        %v1126 = vpop.permute.xlu0 %1125
        %1127 = vrot.lane.b32.xlu0 %v1102, 96
        %v1128 = vpop.permute.xlu0 %1127
        %1129 = vrot.lane.b32.xlu0 %v1103, 96
        %v1130 = vpop.permute.xlu0 %1129
        %v1131 = vsel %vm723, %v1114, %v1116
        %v1132 = vsel %vm723, %v1116, %v1118
        %v1133 = vsel %vm723, %v1120, %v1122
        %v1134 = vsel %vm723, %v1122, %v1124
        %v1135 = vsel %vm723, %v1126, %v1128
        %v1136 = vsel %vm723, %v1128, %v1130
        %v1146 = vadd.f32 %v1071, %v1114
        %v1147 = vadd.f32 %v1072, %v1131
        %v1148 = vadd.f32 %v1073, %v1132
        %v1149 = vadd.f32 %v1074, %v1120
        %v1150 = vadd.f32 %v1075, %v1133
        %v1151 = vadd.f32 %v1076, %v1134
        %v1152 = vadd.f32 %v1077, %v1126
        %v1153 = vadd.f32 %v1078, %v1135
        %v1154 = vadd.f32 %v1079, %v1136
        %s1155 = scalar_lea.vmem %s5, 2
        %v1156 = vld [vmem:[%s1155] ss:$4 sm:$0x3]
        %v1158 = vperm.slane %v1156, 0
        %v1159 = vperm.slane %v1156, 1
        %1160 = vrot.lane.b32.xlu0 %v1158, 113
        %v1161 = vpop.permute.xlu0 %1160
        %1162 = vrot.lane.b32.xlu0 %v1159, 113
        %v1163 = vpop.permute.xlu0 %1162
        %vm1164 = vcmask 924672
        %v1165 = vsel %vm1164, %v1161, %v1163
        %v1169 = vmul.f32 %v1146, %v1161
        %v1170 = vmul.f32 %v1147, %v1165
        %v1171 = vmul.f32 %v1148, %v1163
        %v1172 = vmul.f32 %v1149, %v1161
        %v1173 = vmul.f32 %v1150, %v1165
        %v1174 = vmul.f32 %v1151, %v1163
        %v1175 = vmul.f32 %v1152, %v1161
        %v1176 = vmul.f32 %v1153, %v1165
        %v1177 = vmul.f32 %v1154, %v1163
        %1187 = vrot.lane.b32.xlu0 %v1169, 126
        %v1188 = vpop.permute.xlu0 %1187
        %1189 = vrot.lane.b32.xlu0 %v1170, 126
        %v1190 = vpop.permute.xlu0 %1189
        %1191 = vrot.lane.b32.xlu0 %v1171, 126
        %v1192 = vpop.permute.xlu0 %1191
        %1193 = vrot.lane.b32.xlu0 %v1172, 126
        %v1194 = vpop.permute.xlu0 %1193
        %1195 = vrot.lane.b32.xlu0 %v1173, 126
        %v1196 = vpop.permute.xlu0 %1195
        %1197 = vrot.lane.b32.xlu0 %v1174, 126
        %v1198 = vpop.permute.xlu0 %1197
        %1199 = vrot.lane.b32.xlu0 %v1175, 126
        %v1200 = vpop.permute.xlu0 %1199
        %1201 = vrot.lane.b32.xlu0 %v1176, 126
        %v1202 = vpop.permute.xlu0 %1201
        %1203 = vrot.lane.b32.xlu0 %v1177, 126
        %v1204 = vpop.permute.xlu0 %1203
        %vm1205 = vcmask 1031168
        %v1206 = vsel %vm1205, %v1188, %v1190
        %v1207 = vsel %vm1205, %v1190, %v1192
        %v1208 = vsel %vm1205, %v1194, %v1196
        %v1209 = vsel %vm1205, %v1196, %v1198
        %v1210 = vsel %vm1205, %v1200, %v1202
        %v1211 = vsel %vm1205, %v1202, %v1204
        %v1221 = vadd.f32 %v972, %v1206
        %v1222 = vadd.f32 %v973, %v1207
        %v1223 = vadd.f32 %v974, %v1192
        %v1224 = vadd.f32 %v975, %v1208
        %v1225 = vadd.f32 %v976, %v1209
        %v1226 = vadd.f32 %v977, %v1198
        %v1227 = vadd.f32 %v978, %v1210
        %v1228 = vadd.f32 %v979, %v1211
        %v1229 = vadd.f32 %v980, %v1204
        %v1230 = vld [vmem:[%s6] sm:$0xff]
        %v1231 = vld [vmem:[%s6 + $0x8] sm:$0xff]
        %v1232 = vld [vmem:[%s6 + $0x10] sm:$0xff]
        %1234 = vset.pattern.permute.xlu0 0
        %1235 = vperm.xlu0 %1234, %v1230
        %v1236 = vpop.permute.xlu0 %1235
        %1239 = vset.pattern.permute.xlu0 0
        %1240 = vperm.xlu0 %1239, %v1231
        %v1241 = vpop.permute.xlu0 %1240
        %1244 = vset.pattern.permute.xlu0 0
        %1245 = vperm.xlu0 %1244, %v1232
        %v1246 = vpop.permute.xlu0 %1245
        %v1248 = vmul.f32 %v1221, %v1236
        %v1249 = vmul.f32 %v1222, %v1236
        %v1250 = vmul.f32 %v1223, %v1236
        %v1251 = vmul.f32 %v1224, %v1241
        %v1252 = vmul.f32 %v1225, %v1241
        %v1253 = vmul.f32 %v1226, %v1241
        %v1254 = vmul.f32 %v1227, %v1246
        %v1255 = vmul.f32 %v1228, %v1246
        %v1256 = vmul.f32 %v1229, %v1246
        %v1257 = vld [vmem:[%s7] sm:$0xff]
        %v1258 = vld [vmem:[%s7 + $0x8] sm:$0xff]
        %v1259 = vld [vmem:[%s7 + $0x10] sm:$0xff]
        %1261 = vset.pattern.permute.xlu0 0
        %1262 = vperm.xlu0 %1261, %v1257
        %v1263 = vpop.permute.xlu0 %1262
        %1266 = vset.pattern.permute.xlu0 0
        %1267 = vperm.xlu0 %1266, %v1258
        %v1268 = vpop.permute.xlu0 %1267
        %1271 = vset.pattern.permute.xlu0 0
        %1272 = vperm.xlu0 %1271, %v1259
        %v1273 = vpop.permute.xlu0 %1272
        %v1275 = vadd.f32 %v1248, %v1263
        %v1276 = vadd.f32 %v1249, %v1263
        %v1277 = vadd.f32 %v1250, %v1263
        %v1278 = vadd.f32 %v1251, %v1268
        %v1279 = vadd.f32 %v1252, %v1268
        %v1280 = vadd.f32 %v1253, %v1268
        %v1281 = vadd.f32 %v1254, %v1273
        %v1282 = vadd.f32 %v1255, %v1273
        %v1283 = vadd.f32 %v1256, %v1273
        %v1284 = vmax.f32 %v1275, 0.0
        %v1285 = vmax.f32 %v1276, 0.0
        %v1286 = vmax.f32 %v1277, 0.0
        %v1287 = vmax.f32 %v1278, 0.0
        %v1288 = vmax.f32 %v1279, 0.0
        %v1289 = vmax.f32 %v1280, 0.0
        %v1290 = vmax.f32 %v1281, 0.0
        %v1291 = vmax.f32 %v1282, 0.0
        %v1292 = vmax.f32 %v1283, 0.0
        %v1293 = vld [vmem:[%s8] sm:$0xf]
        %v1294 = vpack.c.bf16 %v1287, %v1284
        %v1295 = vpack.c.bf16 %v1288, %v1285
        %v1296 = vpack.c.bf16 %v1289, %v1286
        %v1297 = vpack.c.bf16 %v1290, %v1290
        %v1298 = vpack.c.bf16 %v1291, %v1291
        %v1299 = vpack.c.bf16 %v1292, %v1292
        %1306 = vrot.lane.b32.xlu0 %v1294, 17
        %v1307 = vpop.permute.xlu0 %1306
        %1308 = vrot.lane.b32.xlu0 %v1295, 17
        %v1309 = vpop.permute.xlu0 %1308
        %1310 = vrot.lane.b32.xlu0 %v1296, 17
        %v1311 = vpop.permute.xlu0 %1310
        %1312 = vrot.lane.b32.xlu0 %v1297, 17
        %v1313 = vpop.permute.xlu0 %1312
        %1314 = vrot.lane.b32.xlu0 %v1298, 17
        %v1315 = vpop.permute.xlu0 %1314
        %1316 = vrot.lane.b32.xlu0 %v1299, 17
        %v1317 = vpop.permute.xlu0 %1316
        %vm1318 = vcmask 138240
        %v1319 = vsel %vm1318, %v1307, %v1309
        %v1320 = vsel %vm1318, %v1309, %v1311
        %v1321 = vsel %vm1318, %v1313, %v1315
        %v1322 = vsel %vm1318, %v1315, %v1317
        %vm1325 = vcmask 195584
        %v1327 = vsel %vm1325, %v1293, 0
        %v1330 = vsel %vm408, %v1321, 0
        %v1333 = vsel %vm408, %v1322, 0
        %1335 = vmatpush.bf16.msra.mxu0 0
        %1336 = vmatpush.bf16.msra.mxu0 0
        %1337 = vmatpush.bf16.msra.mxu0 0
        %1338 = vmatpush.bf16.msra.mxu0 0
        %1339 = vmatpush.bf16.msra.mxu0 0
        %1340 = vmatpush.bf16.msra.mxu0 0
        %1341 = vmatpush.bf16.msra.mxu0 %v1330
        %1342 = vmatpush.bf16.msra.mxu0 %v1319
        %1343 = vmatmul.bf16.gmra.mxu0 %v1327
        %v1344 = vpop.f32.mrf.mxu0
        %v1345 = vadd.f32 0.0, %v1344
        %v1346 = vpop.f32.mrf.mxu0
        %1347 = vdwg.mxu0
        %1348 = vmatpush.bf16.msra.mxu0 0
        %1349 = vmatpush.bf16.msra.mxu0 0
        %1350 = vmatpush.bf16.msra.mxu0 0
        %1351 = vmatpush.bf16.msra.mxu0 0
        %1352 = vmatpush.bf16.msra.mxu0 0
        %1353 = vmatpush.bf16.msra.mxu0 0
        %1354 = vmatpush.bf16.msra.mxu0 %v1333
        %1355 = vmatpush.bf16.msra.mxu0 %v1320
        %1356 = vmatmul.bf16.gmra.mxu0 %v1327
        %v1357 = vpop.f32.mrf.mxu0
        %v1358 = vadd.f32 0.0, %v1357
        %v1359 = vpop.f32.mrf.mxu0
        %1360 = vdwg.mxu0
        %v1361 = vld [vmem:[%s9] sm:$0xff]
        %1363 = vset.pattern.permute.xlu0 0
        %1364 = vperm.xlu0 %1363, %v1361
        %v1365 = vpop.permute.xlu0 %1364
        %v1367 = vmul.f32 %v1345, %v1365
        %v1368 = vmul.f32 %v1358, %v1365
        %v1369 = vld [vmem:[%s10] sm:$0xff]
        %1371 = vset.pattern.permute.xlu0 0
        %1372 = vperm.xlu0 %1371, %v1369
        %v1373 = vpop.permute.xlu0 %1372
        %v1375 = vadd.f32 %v1367, %v1373
        %v1376 = vadd.f32 %v1368, %v1373
        %v1377 = vadd.f32 %v1375, %v386
        %v1378 = vadd.f32 %v1376, %v387
        %1379 = vst [vmem:[%s379] sm:$0xff] %v1377
        %1380 = vst [vmem:[%s379 + $0x8] sm:$0xff] %v1378
        %s1381 = sand.u32 %s269, 1
        %s1382 = scalar_lea.sflag [#allocation4], %s1381
        %s1383 = sand.u32 %s269, 1
        %s1384 = smul.addr %s1383, 16
        %s1385 = scalar_lea.vmem [#allocation3], %s1384
        // Predicated region
        $region65: #{tpu_custom_call.1} parent=63 // pred_check
          %p1386 = pneg %p279
        $region66: #{tpu_custom_call.1} parent=63 // pred_check_branch
          %1388 = sbr.rel (%p1386) target = $region68
        $region67: #{tpu_custom_call.1} parent=63 // pred_region
          %1390 = vsyncadd %s1382, 0
          %s1391 = smul.addr %s25, 2
          %s1392 = smul.addr %s1391, 8
          %s1393 = scalar_lea.hbm %s11, %s1392
          %s1395 = sshll.u32 %s1385, 4
          %s1396 = int_to_ptr.vmem [resolvable:$true] %s1395
          %s1397 = sshll.u32 %s1393, 4
          %s1398 = int_to_ptr.hbm [resolvable:$true] %s1397
          %1400 = dma.vmem_to_hbm [thread:$0]  %s1396, 256, %s1398, %s1382
        $region68: #{tpu_custom_call.1} parent=63 // pred_fallthru
          _
      $region64: #{tpu_custom_call.1} parent=5 // pred_fallthru
        _
      %p1401 = scmp.le.s32.totalorder 2, %s20
      // Predicated region
      $region69: #{tpu_custom_call.1} parent=5 // pred_check
        %p1402 = pneg %p1401
      $region70: #{tpu_custom_call.1} parent=5 // pred_check_branch
        %1404 = sbr.rel (%p1402) target = $region72
      $region71: #{tpu_custom_call.1} parent=5 // pred_region
        %s1405 = ssub.s32 %s20, 2
        // Predicated region
        $region73: #{tpu_custom_call.1} parent=71 // pred_check
          %p1406 = pneg %p285
        $region74: #{tpu_custom_call.1} parent=71 // pred_check_branch
          %1408 = sbr.rel (%p1406) target = $region76
        $region75: #{tpu_custom_call.1} parent=71 // pred_region
          %s1409 = sand.u32 %s270, 1
          %s1410 = scalar_lea.sflag [#allocation4], %s1409
          %s1411 = sand.u32 %s270, 1
          %s1412 = smul.addr %s1411, 16
          %s1413 = scalar_lea.vmem [#allocation3], %s1412
          %1415 = dma.done %s1410, 256
        $region76: #{tpu_custom_call.1} parent=71 // pred_fallthru
          _
      $region72: #{tpu_custom_call.1} parent=5 // pred_fallthru
        _
    $region6: #{tpu_custom_call.1} parent=1 // loop_footer
      %s24 = sadd.s32 1, %s20
    $region7: #{tpu_custom_call.1} parent=1 // loop_footer_branch
      %19 = sbr.rel target = $region3
    $region8: #{tpu_custom_call.1} parent=1 // loop_exit
      _
    %1416 = vsyncpa [#allocation4], 1
    %s1417 = scalar_lea.sflag [#allocation4], 1
    %1418 = vsyncpa %s1417, 1

</llo_original>
